<compile_context>
chip_gen: v6e
topology: v6e:2x2x1
jax: 0.10.0
libtpu: 0.0.40
codegen_flags: <defaults>
</compile_context>

<pallas_src>
import numpy as np
import jax
import jax.numpy as jnp
from jax.experimental import pallas as pl
from jax.experimental.pallas import tpu as pltpu


def _round_up(n, m):
    return ((n + m - 1) // m) * m


def _perm_gates(w):
    """Permute the 4H gate axis (last dim) from PyTorch's [i, f, g, o] to [i, f, o, g]."""
    h4 = w.shape[-1]
    h = h4 // 4
    return jnp.concatenate([w[..., :2 * h], w[..., 3 * h:], w[..., 2 * h:3 * h]], axis=-1)


# ------------------------ fused decoder kernel (embed + LSTM + linear) ------------------------

def _make_decoder_kernel(S, B, T, E, H, L, Vp):
    G = 4 * H            # per-layer gate width
    LH = L * H            # fused hidden-state width
    GW = 4 * L * H        # fused gate width (gate-major, layer-interleaved)
    W = S + L - 1         # wavefront steps

    def kernel(feat_ref, cap_ref, eproj_ref, wih0_ref, b0_ref, b_rest_ref,
               wblk_ref, linw_ref, linb_ref, out_ref):
        f32 = jnp.float32

        # ---------------- hoisted, off-chain work (one-shot MXU matmuls) ----------------
        b0 = b0_ref[...]                                                    # (1, G)
        # t = 0 input: image features through the layer-0 input projection.
        gx_feat = jnp.dot(feat_ref[...], wih0_ref[...],
                          preferred_element_type=f32) + b0                  # (B, G)
        # t >= 1 inputs: embedding folded through W_ih0 (eproj = embed @ W_ih0^T),
        # gathered with a one-hot matmul (exact: one-hot rows select table rows).
        onehot = (cap_ref[...] ==
                  jax.lax.broadcasted_iota(jnp.int32, (B * T, Vp), 1)).astype(f32)
        gx_cap = jnp.dot(onehot, eproj_ref[...],
                         preferred_element_type=f32) + b0                   # (B*T, G)
        gx_cap3 = gx_cap.reshape(B, T, G)

        # Time-major per-step layer-0 gate inputs (+ zero pads for the wavefront tail).
        gx_steps = [gx_feat] + [gx_cap3[:, t, :] for t in range(T)]
        gx_steps += [jnp.zeros((B, G), f32)] * (L - 1)                      # W entries

        # Interleave into the fused gate-major addend: layer 0 columns get gx[w],
        # layer l >= 1 columns get that layer's (constant) bias. Built once, before the loop.
        gx_all = jnp.concatenate([g[None] for g in gx_steps], axis=0)       # (W, B, G)
        b_rest = b_rest_ref[...]                                            # (max(L-1,1), G)
        pieces = []
        for k in range(4):                                                  # gate index (i,f,o,g)
            pieces.append(gx_all[:, :, k * H:(k + 1) * H])                  # layer 0
            for l in range(1, L):
                pieces.append(jnp.broadcast_to(
                    b_rest[l - 1:l, k * H:(k + 1) * H][None], (W, B, H)))   # layer l bias
        addend = jnp.concatenate(pieces, axis=-1)                           # (W, B, GW)

        wblk = wblk_ref[...]                                                # (LH, GW)
        tanh_mask = jax.lax.broadcasted_iota(jnp.int32, (B, GW), 1) >= 3 * LH
        lane_lh = jax.lax.broadcasted_iota(jnp.int32, (B, LH), 1)

        # ------------- serial wavefront recurrence: 1 matmul + 3 EUP calls per step -------------
        h_all = jnp.zeros((B, LH), f32)     # [h_0 | h_1 | ... | h_{L-1}]
        c_all = jnp.zeros((B, LH), f32)
        outs = []
        for w in range(W):
            if w == 0:
                gates = addend[0]           # h_all == 0, skip the dead matmul
            else:
                gates = jnp.dot(h_all, wblk, preferred_element_type=f32) + addend[w]
            # 2 full-width EUP passes + one hoisted-mask blend (gate order [i, f, o, g]).
            act = jnp.where(tanh_mask, jnp.tanh(gates), jax.nn.sigmoid(gates))
            i_g = act[:, :LH]
            f_g = act[:, LH:2 * LH]
            o_g = act[:, 2 * LH:3 * LH]
            g_g = act[:, 3 * LH:]
            c_all = f_g * c_all + i_g * g_g
            h_all = o_g * jnp.tanh(c_all)
            if w < L - 1:
                # layers l > w have not started yet: keep their h/c at zero
                live = (lane_lh < (w + 1) * H).astype(f32)
                h_all = h_all * live
                c_all = c_all * live
            else:
                # top-layer hidden for time t = w - (L-1)
                outs.append(h_all[:, (L - 1) * H:])
            del gates, act, i_g, f_g, o_g, g_g

        # ---------------- fused output projection (tail, single MXU matmul) ----------------
        hidden = jnp.concatenate(outs, axis=0)                              # (S*B, H), time-major
        out_ref[...] = (jnp.dot(hidden, linw_ref[...], preferred_element_type=f32)
                        + linb_ref[...])                                    # (S*B, Vp) lane-dense

    return kernel


# ------------------------------------ DecoderRNN forward ------------------------------------

def decoder_forward(params, features, captions, lengths, num_layers):
    """features: (B, E); captions: (B, T) int32; lengths: python list, sorted descending."""
    f32 = jnp.float32
    B, E = features.shape
    _, T = captions.shape
    S = T + 1
    H = params["w_hh_0"].shape[1]
    V = params["embed"].shape[0]
    L = num_layers
    G, LH, GW = 4 * H, L * H, 4 * L * H
    Vp = _round_up(V, 128)                  # lane-dense logits / one-hot width

    # ---- one-time weight packing (gate order [i,f,o,g], transposed, padded) ----
    wih_t = [_perm_gates(params[f"w_ih_{l}"].T.astype(f32)) for l in range(L)]   # (in, 4H)
    whh_t = [_perm_gates(params[f"w_hh_{l}"].T.astype(f32)) for l in range(L)]   # (H, 4H)
    bias = [_perm_gates((params[f"b_ih_{l}"] + params[f"b_hh_{l}"]).reshape(1, -1).astype(f32))
            for l in range(L)]                                                   # (1, 4H)

    # Embedding folded through the layer-0 input projection, vocab-padded to Vp rows.
    embed_proj = jnp.zeros((Vp, G), f32).at[:V].set(params["embed"].astype(f32) @ wih_t[0])

    # Block RHS for the wavefront step: rows = fused state [h_0 | ... | h_{L-1}],
    # cols = gate-major [i(all layers), f(...), o(...), g(...)], each chunk H lanes wide.
    w_blk = jnp.zeros((LH, GW), f32)
    for l in range(L):
        for k in range(4):
            c0 = (k * L + l) * H
            w_blk = w_blk.at[l * H:(l + 1) * H, c0:c0 + H].set(whh_t[l][:, k * H:(k + 1) * H])
            if l + 1 < L:
                c1 = (k * L + l + 1) * H
                w_blk = w_blk.at[l * H:(l + 1) * H, c1:c1 + H].set(
                    wih_t[l + 1][:, k * H:(k + 1) * H])

    b_rest = (jnp.concatenate(bias[1:], axis=0) if L > 1 else jnp.zeros((1, G), f32))

    lin_w_t = jnp.zeros((H, Vp), f32).at[:, :V].set(params["lin_w"].T.astype(f32))
    lin_b = jnp.zeros((1, Vp), f32).at[:, :V].set(params["lin_b"].reshape(1, -1).astype(f32))

    cap2 = captions.reshape(B * T, 1).astype(jnp.int32)   # batch-major flat, (B*T, 1)

    kernel = _make_decoder_kernel(S, B, T, E, H, L, Vp)
    logits = pl.pallas_call(
        kernel,
        out_shape=jax.ShapeDtypeStruct((S * B, Vp), f32),
        in_specs=[pl.BlockSpec(memory_space=pltpu.MemorySpace.VMEM)] * 9,
        out_specs=pl.BlockSpec(memory_space=pltpu.MemorySpace.VMEM),
        compiler_params=pltpu.CompilerParams(vmem_limit_bytes=32 * 1024 * 1024),
    )(features.astype(f32), cap2, embed_proj, wih_t[0], bias[0], b_rest,
      w_blk, lin_w_t, lin_b)

    # pack_padded_sequence(batch_first=True) data order: time-major over valid entries.
    # (lengths are Python-static here; the gather commutes with the row-wise linear.)
    idx = [t * B + b for t in range(S) for b in range(B) if lengths[b] > t]
    return logits[jnp.asarray(idx, dtype=jnp.int32)][:, :V]


# ------------------------------------------ Params ------------------------------------------

def init_params(key, embed_size, hidden_size, vocab_size, num_layers):
    params = {}
    keys = jax.random.split(key, 3 + 4 * num_layers)
    params["embed"] = 0.5 * jax.random.normal(keys[0], (vocab_size, embed_size), jnp.float32)
    for l in range(num_layers):
        in_dim = embed_size if l == 0 else hidden_size
        k = keys[3 + 4 * l: 3 + 4 * (l + 1)]
        params[f"w_ih_{l}"] = 0.1 * jax.random.normal(k[0], (4 * hidden_size, in_dim), jnp.float32)
        params[f"w_hh_{l}"] = 0.1 * jax.random.normal(k[1], (4 * hidden_size, hidden_size), jnp.float32)
        params[f"b_ih_{l}"] = 0.1 * jax.random.normal(k[2], (4 * hidden_size,), jnp.float32)
        params[f"b_hh_{l}"] = 0.1 * jax.random.normal(k[3], (4 * hidden_size,), jnp.float32)
    params["lin_w"] = 0.1 * jax.random.normal(keys[1], (vocab_size, hidden_size), jnp.float32)
    params["lin_b"] = 0.1 * jax.random.normal(keys[2], (vocab_size,), jnp.float32)
    return params


# ----------------------------------------- Reference -----------------------------------------

def _sigmoid(z):
    return 1.0 / (1.0 + np.exp(-z))


def reference_forward(params, features, captions, lengths, num_layers):
    embed = np.asarray(params["embed"])
    x = np.concatenate(
        [np.asarray(features)[:, None, :], embed[np.asarray(captions)]], axis=1
    )  # (B, S, E)
    B, S, _ = x.shape
    inp = x
    for l in range(num_layers):
        w_ih = np.asarray(params[f"w_ih_{l}"])
        w_hh = np.asarray(params[f"w_hh_{l}"])
        b = np.asarray(params[f"b_ih_{l}"]) + np.asarray(params[f"b_hh_{l}"])
        H = w_hh.shape[1]
        h = np.zeros((B, H), np.float32)
        c = np.zeros((B, H), np.float32)
        outs = np.zeros((B, S, H), np.float32)
        for t in range(S):
            gates = inp[:, t] @ w_ih.T + h @ w_hh.T + b
            i = _sigmoid(gates[:, :H])
            f = _sigmoid(gates[:, H:2 * H])
            g = np.tanh(gates[:, 2 * H:3 * H])
            o = _sigmoid(gates[:, 3 * H:])
            c = f * c + i * g
            h = o * np.tanh(c)
            outs[:, t] = h
        inp = outs
    packed = np.concatenate(
        [outs[[b for b in range(B) if lengths[b] > t], t]
         for t in range(S) if any(Lq > t for Lq in lengths)],
        axis=0,
    )
    return packed @ np.asarray(params["lin_w"]).T + np.asarray(params["lin_b"])


# ------------------------------------------- Main --------------------------------------------

if __name__ == "__main__":
    embed_size, hidden_size, vocab_size, num_layers = 32, 32, 48, 2
    B, T = 4, 8                      # seq after features-concat = T + 1 = 9
    lengths = [9, 7, 5, 3]           # sorted descending, as pack_padded_sequence requires

    key = jax.random.PRNGKey(0)
    pkey, fkey, ckey = jax.random.split(key, 3)
    params = init_params(pkey, embed_size, hidden_size, vocab_size, num_layers)
    features = jax.random.normal(fkey, (B, embed_size), jnp.float32)
    captions = jax.random.randint(ckey, (B, T), 0, vocab_size, dtype=jnp.int32)

    out = decoder_forward(params, features, captions, lengths, num_layers)
    out = jax.block_until_ready(out)

    ref = reference_forward(params, features, captions, lengths, num_layers)
    assert out.shape == (sum(lengths), vocab_size), out.shape
    np.testing.assert_allclose(np.asarray(out), ref, rtol=2e-3, atol=2e-3)

    print("KERNEL_OK")
</pallas_src>

<mosaic_0001>
module attributes {stable_mosaic.version = 11 : i64} {
  func.func @kernel(%arg0: memref<4x32xf32, #tpu.memory_space<vmem>>, %arg1: memref<32x1xi32, #tpu.memory_space<vmem>>, %arg2: memref<128x128xf32, #tpu.memory_space<vmem>>, %arg3: memref<32x128xf32, #tpu.memory_space<vmem>>, %arg4: memref<1x128xf32, #tpu.memory_space<vmem>>, %arg5: memref<1x128xf32, #tpu.memory_space<vmem>>, %arg6: memref<64x256xf32, #tpu.memory_space<vmem>>, %arg7: memref<32x128xf32, #tpu.memory_space<vmem>>, %arg8: memref<1x128xf32, #tpu.memory_space<vmem>>, %arg9: memref<36x128xf32, #tpu.memory_space<vmem>>) attributes {dimension_semantics = [], scalar_prefetch = 0 : i64, scratch_operands = 0 : i64, tpu.core_type = #tpu.core_type<tc>} {
    %c0 = arith.constant 0 : index
    %c0_0 = arith.constant 0 : index
    %0 = vector.load %arg4[%c0, %c0_0] : memref<1x128xf32, #tpu.memory_space<vmem>>, vector<1x128xf32>
    %c0_1 = arith.constant 0 : index
    %c0_2 = arith.constant 0 : index
    %1 = vector.load %arg0[%c0_1, %c0_2] : memref<4x32xf32, #tpu.memory_space<vmem>>, vector<4x32xf32>
    %c0_3 = arith.constant 0 : index
    %c0_4 = arith.constant 0 : index
    %2 = vector.load %arg3[%c0_3, %c0_4] : memref<32x128xf32, #tpu.memory_space<vmem>>, vector<32x128xf32>
    %cst = arith.constant dense<0.000000e+00> : vector<4x128xf32>
    %3 = tpu.matmul %1, %2, %cst {dimension_numbers = #tpu.dot_dimension_numbers<[1], [0], [0], [1], [0, 0, 1, 1], [], []>} : vector<4x32xf32>, vector<32x128xf32>, vector<4x128xf32> -> vector<4x128xf32>
    %4 = vector.broadcast %0 : vector<1x128xf32> to vector<4x128xf32>
    %5 = arith.addf %3, %4 : vector<4x128xf32>
    %c0_5 = arith.constant 0 : index
    %c0_6 = arith.constant 0 : index
    %6 = vector.load %arg1[%c0_5, %c0_6] : memref<32x1xi32, #tpu.memory_space<vmem>>, vector<32x1xi32>
    %7 = tpu.iota {dimensions = array<i32: 1>} : vector<32x128xi32>
    %8 = vector.broadcast %6 : vector<32x1xi32> to vector<32x128xi32>
    %9 = arith.cmpi eq, %8, %7 : vector<32x128xi32>
    %10 = arith.extui %9 : vector<32x128xi1> to vector<32x128xi32>
    %11 = arith.sitofp %10 : vector<32x128xi32> to vector<32x128xf32>
    %c0_7 = arith.constant 0 : index
    %c0_8 = arith.constant 0 : index
    %12 = vector.load %arg2[%c0_7, %c0_8] : memref<128x128xf32, #tpu.memory_space<vmem>>, vector<128x128xf32>
    %cst_9 = arith.constant dense<0.000000e+00> : vector<32x128xf32>
    %13 = tpu.matmul %11, %12, %cst_9 {dimension_numbers = #tpu.dot_dimension_numbers<[1], [0], [0], [1], [0, 0, 1, 1], [], []>} : vector<32x128xf32>, vector<128x128xf32>, vector<32x128xf32> -> vector<32x128xf32>
    %14 = vector.broadcast %0 : vector<1x128xf32> to vector<32x128xf32>
    %15 = arith.addf %13, %14 : vector<32x128xf32>
    %16 = vector.shape_cast %15 : vector<32x128xf32> to vector<4x8x128xf32>
    %17 = vector.extract_strided_slice %16 {offsets = [0, 0, 0], sizes = [4, 1, 128], strides = [1, 1, 1]} : vector<4x8x128xf32> to vector<4x1x128xf32>
    %18 = vector.shape_cast %17 : vector<4x1x128xf32> to vector<4x128xf32>
    %19 = vector.extract_strided_slice %16 {offsets = [0, 1, 0], sizes = [4, 1, 128], strides = [1, 1, 1]} : vector<4x8x128xf32> to vector<4x1x128xf32>
    %20 = vector.shape_cast %19 : vector<4x1x128xf32> to vector<4x128xf32>
    %21 = vector.extract_strided_slice %16 {offsets = [0, 2, 0], sizes = [4, 1, 128], strides = [1, 1, 1]} : vector<4x8x128xf32> to vector<4x1x128xf32>
    %22 = vector.shape_cast %21 : vector<4x1x128xf32> to vector<4x128xf32>
    %23 = vector.extract_strided_slice %16 {offsets = [0, 3, 0], sizes = [4, 1, 128], strides = [1, 1, 1]} : vector<4x8x128xf32> to vector<4x1x128xf32>
    %24 = vector.shape_cast %23 : vector<4x1x128xf32> to vector<4x128xf32>
    %25 = vector.extract_strided_slice %16 {offsets = [0, 4, 0], sizes = [4, 1, 128], strides = [1, 1, 1]} : vector<4x8x128xf32> to vector<4x1x128xf32>
    %26 = vector.shape_cast %25 : vector<4x1x128xf32> to vector<4x128xf32>
    %27 = vector.extract_strided_slice %16 {offsets = [0, 5, 0], sizes = [4, 1, 128], strides = [1, 1, 1]} : vector<4x8x128xf32> to vector<4x1x128xf32>
    %28 = vector.shape_cast %27 : vector<4x1x128xf32> to vector<4x128xf32>
    %29 = vector.extract_strided_slice %16 {offsets = [0, 6, 0], sizes = [4, 1, 128], strides = [1, 1, 1]} : vector<4x8x128xf32> to vector<4x1x128xf32>
    %30 = vector.shape_cast %29 : vector<4x1x128xf32> to vector<4x128xf32>
    %31 = vector.extract_strided_slice %16 {offsets = [0, 7, 0], sizes = [4, 1, 128], strides = [1, 1, 1]} : vector<4x8x128xf32> to vector<4x1x128xf32>
    %32 = vector.shape_cast %31 : vector<4x1x128xf32> to vector<4x128xf32>
    %cst_10 = arith.constant 0.000000e+00 : f32
    %33 = vector.broadcast %cst_10 : f32 to vector<4x128xf32>
    %34 = vector.shape_cast %5 : vector<4x128xf32> to vector<1x4x128xf32>
    %35 = vector.shape_cast %18 : vector<4x128xf32> to vector<1x4x128xf32>
    %36 = vector.shape_cast %20 : vector<4x128xf32> to vector<1x4x128xf32>
    %37 = vector.shape_cast %22 : vector<4x128xf32> to vector<1x4x128xf32>
    %38 = vector.shape_cast %24 : vector<4x128xf32> to vector<1x4x128xf32>
    %39 = vector.shape_cast %26 : vector<4x128xf32> to vector<1x4x128xf32>
    %40 = vector.shape_cast %28 : vector<4x128xf32> to vector<1x4x128xf32>
    %41 = vector.shape_cast %30 : vector<4x128xf32> to vector<1x4x128xf32>
    %42 = vector.shape_cast %32 : vector<4x128xf32> to vector<1x4x128xf32>
    %43 = vector.shape_cast %33 : vector<4x128xf32> to vector<1x4x128xf32>
    %44 = tpu.concatenate %34, %35, %36, %37, %38, %39, %40, %41, %42, %43 in 0 : vector<1x4x128xf32>, vector<1x4x128xf32>, vector<1x4x128xf32>, vector<1x4x128xf32>, vector<1x4x128xf32>, vector<1x4x128xf32>, vector<1x4x128xf32>, vector<1x4x128xf32>, vector<1x4x128xf32>, vector<1x4x128xf32> -> vector<10x4x128xf32>
    %c0_11 = arith.constant 0 : index
    %c0_12 = arith.constant 0 : index
    %45 = vector.load %arg5[%c0_11, %c0_12] : memref<1x128xf32, #tpu.memory_space<vmem>>, vector<1x128xf32>
    %46 = vector.extract_strided_slice %44 {offsets = [0, 0, 0], sizes = [10, 4, 32], strides = [1, 1, 1]} : vector<10x4x128xf32> to vector<10x4x32xf32>
    %47 = vector.extract_strided_slice %45 {offsets = [0, 0], sizes = [1, 32], strides = [1, 1]} : vector<1x128xf32> to vector<1x32xf32>
    %48 = vector.shape_cast %47 : vector<1x32xf32> to vector<1x1x32xf32>
    %49 = vector.shape_cast %48 : vector<1x1x32xf32> to vector<1x1x32xf32>
    %50 = vector.broadcast %49 : vector<1x1x32xf32> to vector<10x4x32xf32>
    %51 = vector.extract_strided_slice %44 {offsets = [0, 0, 32], sizes = [10, 4, 32], strides = [1, 1, 1]} : vector<10x4x128xf32> to vector<10x4x32xf32>
    %52 = vector.extract_strided_slice %45 {offsets = [0, 32], sizes = [1, 32], strides = [1, 1]} : vector<1x128xf32> to vector<1x32xf32>
    %53 = vector.shape_cast %52 : vector<1x32xf32> to vector<1x1x32xf32>
    %54 = vector.shape_cast %53 : vector<1x1x32xf32> to vector<1x1x32xf32>
    %55 = vector.broadcast %54 : vector<1x1x32xf32> to vector<10x4x32xf32>
    %56 = vector.extract_strided_slice %44 {offsets = [0, 0, 64], sizes = [10, 4, 32], strides = [1, 1, 1]} : vector<10x4x128xf32> to vector<10x4x32xf32>
    %57 = vector.extract_strided_slice %45 {offsets = [0, 64], sizes = [1, 32], strides = [1, 1]} : vector<1x128xf32> to vector<1x32xf32>
    %58 = vector.shape_cast %57 : vector<1x32xf32> to vector<1x1x32xf32>
    %59 = vector.shape_cast %58 : vector<1x1x32xf32> to vector<1x1x32xf32>
    %60 = vector.broadcast %59 : vector<1x1x32xf32> to vector<10x4x32xf32>
    %61 = vector.extract_strided_slice %44 {offsets = [0, 0, 96], sizes = [10, 4, 32], strides = [1, 1, 1]} : vector<10x4x128xf32> to vector<10x4x32xf32>
    %62 = vector.extract_strided_slice %45 {offsets = [0, 96], sizes = [1, 32], strides = [1, 1]} : vector<1x128xf32> to vector<1x32xf32>
    %63 = vector.shape_cast %62 : vector<1x32xf32> to vector<1x1x32xf32>
    %64 = vector.shape_cast %63 : vector<1x1x32xf32> to vector<1x1x32xf32>
    %65 = vector.broadcast %64 : vector<1x1x32xf32> to vector<10x4x32xf32>
    %66 = tpu.concatenate %46, %50, %51, %55, %56, %60, %61, %65 in 2 : vector<10x4x32xf32>, vector<10x4x32xf32>, vector<10x4x32xf32>, vector<10x4x32xf32>, vector<10x4x32xf32>, vector<10x4x32xf32>, vector<10x4x32xf32>, vector<10x4x32xf32> -> vector<10x4x256xf32>
    %c0_13 = arith.constant 0 : index
    %c0_14 = arith.constant 0 : index
    %67 = vector.load %arg6[%c0_13, %c0_14] : memref<64x256xf32, #tpu.memory_space<vmem>>, vector<64x256xf32>
    %68 = tpu.iota {dimensions = array<i32: 1>} : vector<4x256xi32>
    %c192_i32 = arith.constant 192 : i32
    %69 = vector.broadcast %c192_i32 : i32 to vector<4x256xi32>
    %70 = arith.cmpi sge, %68, %69 : vector<4x256xi32>
    %71 = tpu.iota {dimensions = array<i32: 1>} : vector<4x64xi32>
    %cst_15 = arith.constant 0.000000e+00 : f32
    %72 = vector.broadcast %cst_15 : f32 to vector<4x64xf32>
    %73 = vector.extract_strided_slice %66 {offsets = [0, 0, 0], sizes = [1, 4, 256], strides = [1, 1, 1]} : vector<10x4x256xf32> to vector<1x4x256xf32>
    %74 = vector.shape_cast %73 : vector<1x4x256xf32> to vector<4x256xf32>
    %75 = math.tanh %74 : vector<4x256xf32>
    %76 = arith.negf %74 : vector<4x256xf32>
    %77 = math.exp %76 : vector<4x256xf32>
    %cst_16 = arith.constant 1.000000e+00 : f32
    %78 = vector.broadcast %cst_16 : f32 to vector<4x256xf32>
    %79 = arith.addf %78, %77 : vector<4x256xf32>
    %80 = arith.divf %78, %79 : vector<4x256xf32>
    %81 = arith.select %70, %75, %80 : vector<4x256xi1>, vector<4x256xf32>
    %82 = vector.extract_strided_slice %81 {offsets = [0, 0], sizes = [4, 64], strides = [1, 1]} : vector<4x256xf32> to vector<4x64xf32>
    %83 = vector.extract_strided_slice %81 {offsets = [0, 64], sizes = [4, 64], strides = [1, 1]} : vector<4x256xf32> to vector<4x64xf32>
    %84 = vector.extract_strided_slice %81 {offsets = [0, 128], sizes = [4, 64], strides = [1, 1]} : vector<4x256xf32> to vector<4x64xf32>
    %85 = vector.extract_strided_slice %81 {offsets = [0, 192], sizes = [4, 64], strides = [1, 1]} : vector<4x256xf32> to vector<4x64xf32>
    %86 = arith.mulf %83, %72 : vector<4x64xf32>
    %87 = arith.mulf %82, %85 : vector<4x64xf32>
    %88 = arith.addf %86, %87 : vector<4x64xf32>
    %89 = math.tanh %88 : vector<4x64xf32>
    %90 = arith.mulf %84, %89 : vector<4x64xf32>
    %c32_i32 = arith.constant 32 : i32
    %91 = vector.broadcast %c32_i32 : i32 to vector<4x64xi32>
    %92 = arith.cmpi slt, %71, %91 : vector<4x64xi32>
    %93 = arith.extui %92 : vector<4x64xi1> to vector<4x64xi32>
    %94 = arith.sitofp %93 : vector<4x64xi32> to vector<4x64xf32>
    %95 = arith.mulf %90, %94 : vector<4x64xf32>
    %96 = arith.mulf %88, %94 : vector<4x64xf32>
    %cst_17 = arith.constant dense<0.000000e+00> : vector<4x256xf32>
    %97 = tpu.matmul %95, %67, %cst_17 {dimension_numbers = #tpu.dot_dimension_numbers<[1], [0], [0], [1], [0, 0, 1, 1], [], []>} : vector<4x64xf32>, vector<64x256xf32>, vector<4x256xf32> -> vector<4x256xf32>
    %98 = vector.extract_strided_slice %66 {offsets = [1, 0, 0], sizes = [1, 4, 256], strides = [1, 1, 1]} : vector<10x4x256xf32> to vector<1x4x256xf32>
    %99 = vector.shape_cast %98 : vector<1x4x256xf32> to vector<4x256xf32>
    %100 = arith.addf %97, %99 : vector<4x256xf32>
    %101 = math.tanh %100 : vector<4x256xf32>
    %102 = arith.negf %100 : vector<4x256xf32>
    %103 = math.exp %102 : vector<4x256xf32>
    %cst_18 = arith.constant 1.000000e+00 : f32
    %104 = vector.broadcast %cst_18 : f32 to vector<4x256xf32>
    %105 = arith.addf %104, %103 : vector<4x256xf32>
    %106 = arith.divf %104, %105 : vector<4x256xf32>
    %107 = arith.select %70, %101, %106 : vector<4x256xi1>, vector<4x256xf32>
    %108 = vector.extract_strided_slice %107 {offsets = [0, 0], sizes = [4, 64], strides = [1, 1]} : vector<4x256xf32> to vector<4x64xf32>
    %109 = vector.extract_strided_slice %107 {offsets = [0, 64], sizes = [4, 64], strides = [1, 1]} : vector<4x256xf32> to vector<4x64xf32>
    %110 = vector.extract_strided_slice %107 {offsets = [0, 128], sizes = [4, 64], strides = [1, 1]} : vector<4x256xf32> to vector<4x64xf32>
    %111 = vector.extract_strided_slice %107 {offsets = [0, 192], sizes = [4, 64], strides = [1, 1]} : vector<4x256xf32> to vector<4x64xf32>
    %112 = arith.mulf %109, %96 : vector<4x64xf32>
    %113 = arith.mulf %108, %111 : vector<4x64xf32>
    %114 = arith.addf %112, %113 : vector<4x64xf32>
    %115 = math.tanh %114 : vector<4x64xf32>
    %116 = arith.mulf %110, %115 : vector<4x64xf32>
    %117 = vector.extract_strided_slice %116 {offsets = [0, 32], sizes = [4, 32], strides = [1, 1]} : vector<4x64xf32> to vector<4x32xf32>
    %cst_19 = arith.constant dense<0.000000e+00> : vector<4x256xf32>
    %118 = tpu.matmul %116, %67, %cst_19 {dimension_numbers = #tpu.dot_dimension_numbers<[1], [0], [0], [1], [0, 0, 1, 1], [], []>} : vector<4x64xf32>, vector<64x256xf32>, vector<4x256xf32> -> vector<4x256xf32>
    %119 = vector.extract_strided_slice %66 {offsets = [2, 0, 0], sizes = [1, 4, 256], strides = [1, 1, 1]} : vector<10x4x256xf32> to vector<1x4x256xf32>
    %120 = vector.shape_cast %119 : vector<1x4x256xf32> to vector<4x256xf32>
    %121 = arith.addf %118, %120 : vector<4x256xf32>
    %122 = math.tanh %121 : vector<4x256xf32>
    %123 = arith.negf %121 : vector<4x256xf32>
    %124 = math.exp %123 : vector<4x256xf32>
    %cst_20 = arith.constant 1.000000e+00 : f32
    %125 = vector.broadcast %cst_20 : f32 to vector<4x256xf32>
    %126 = arith.addf %125, %124 : vector<4x256xf32>
    %127 = arith.divf %125, %126 : vector<4x256xf32>
    %128 = arith.select %70, %122, %127 : vector<4x256xi1>, vector<4x256xf32>
    %129 = vector.extract_strided_slice %128 {offsets = [0, 0], sizes = [4, 64], strides = [1, 1]} : vector<4x256xf32> to vector<4x64xf32>
    %130 = vector.extract_strided_slice %128 {offsets = [0, 64], sizes = [4, 64], strides = [1, 1]} : vector<4x256xf32> to vector<4x64xf32>
    %131 = vector.extract_strided_slice %128 {offsets = [0, 128], sizes = [4, 64], strides = [1, 1]} : vector<4x256xf32> to vector<4x64xf32>
    %132 = vector.extract_strided_slice %128 {offsets = [0, 192], sizes = [4, 64], strides = [1, 1]} : vector<4x256xf32> to vector<4x64xf32>
    %133 = arith.mulf %130, %114 : vector<4x64xf32>
    %134 = arith.mulf %129, %132 : vector<4x64xf32>
    %135 = arith.addf %133, %134 : vector<4x64xf32>
    %136 = math.tanh %135 : vector<4x64xf32>
    %137 = arith.mulf %131, %136 : vector<4x64xf32>
    %138 = vector.extract_strided_slice %137 {offsets = [0, 32], sizes = [4, 32], strides = [1, 1]} : vector<4x64xf32> to vector<4x32xf32>
    %cst_21 = arith.constant dense<0.000000e+00> : vector<4x256xf32>
    %139 = tpu.matmul %137, %67, %cst_21 {dimension_numbers = #tpu.dot_dimension_numbers<[1], [0], [0], [1], [0, 0, 1, 1], [], []>} : vector<4x64xf32>, vector<64x256xf32>, vector<4x256xf32> -> vector<4x256xf32>
    %140 = vector.extract_strided_slice %66 {offsets = [3, 0, 0], sizes = [1, 4, 256], strides = [1, 1, 1]} : vector<10x4x256xf32> to vector<1x4x256xf32>
    %141 = vector.shape_cast %140 : vector<1x4x256xf32> to vector<4x256xf32>
    %142 = arith.addf %139, %141 : vector<4x256xf32>
    %143 = math.tanh %142 : vector<4x256xf32>
    %144 = arith.negf %142 : vector<4x256xf32>
    %145 = math.exp %144 : vector<4x256xf32>
    %cst_22 = arith.constant 1.000000e+00 : f32
    %146 = vector.broadcast %cst_22 : f32 to vector<4x256xf32>
    %147 = arith.addf %146, %145 : vector<4x256xf32>
    %148 = arith.divf %146, %147 : vector<4x256xf32>
    %149 = arith.select %70, %143, %148 : vector<4x256xi1>, vector<4x256xf32>
    %150 = vector.extract_strided_slice %149 {offsets = [0, 0], sizes = [4, 64], strides = [1, 1]} : vector<4x256xf32> to vector<4x64xf32>
    %151 = vector.extract_strided_slice %149 {offsets = [0, 64], sizes = [4, 64], strides = [1, 1]} : vector<4x256xf32> to vector<4x64xf32>
    %152 = vector.extract_strided_slice %149 {offsets = [0, 128], sizes = [4, 64], strides = [1, 1]} : vector<4x256xf32> to vector<4x64xf32>
    %153 = vector.extract_strided_slice %149 {offsets = [0, 192], sizes = [4, 64], strides = [1, 1]} : vector<4x256xf32> to vector<4x64xf32>
    %154 = arith.mulf %151, %135 : vector<4x64xf32>
    %155 = arith.mulf %150, %153 : vector<4x64xf32>
    %156 = arith.addf %154, %155 : vector<4x64xf32>
    %157 = math.tanh %156 : vector<4x64xf32>
    %158 = arith.mulf %152, %157 : vector<4x64xf32>
    %159 = vector.extract_strided_slice %158 {offsets = [0, 32], sizes = [4, 32], strides = [1, 1]} : vector<4x64xf32> to vector<4x32xf32>
    %cst_23 = arith.constant dense<0.000000e+00> : vector<4x256xf32>
    %160 = tpu.matmul %158, %67, %cst_23 {dimension_numbers = #tpu.dot_dimension_numbers<[1], [0], [0], [1], [0, 0, 1, 1], [], []>} : vector<4x64xf32>, vector<64x256xf32>, vector<4x256xf32> -> vector<4x256xf32>
    %161 = vector.extract_strided_slice %66 {offsets = [4, 0, 0], sizes = [1, 4, 256], strides = [1, 1, 1]} : vector<10x4x256xf32> to vector<1x4x256xf32>
    %162 = vector.shape_cast %161 : vector<1x4x256xf32> to vector<4x256xf32>
    %163 = arith.addf %160, %162 : vector<4x256xf32>
    %164 = math.tanh %163 : vector<4x256xf32>
    %165 = arith.negf %163 : vector<4x256xf32>
    %166 = math.exp %165 : vector<4x256xf32>
    %cst_24 = arith.constant 1.000000e+00 : f32
    %167 = vector.broadcast %cst_24 : f32 to vector<4x256xf32>
    %168 = arith.addf %167, %166 : vector<4x256xf32>
    %169 = arith.divf %167, %168 : vector<4x256xf32>
    %170 = arith.select %70, %164, %169 : vector<4x256xi1>, vector<4x256xf32>
    %171 = vector.extract_strided_slice %170 {offsets = [0, 0], sizes = [4, 64], strides = [1, 1]} : vector<4x256xf32> to vector<4x64xf32>
    %172 = vector.extract_strided_slice %170 {offsets = [0, 64], sizes = [4, 64], strides = [1, 1]} : vector<4x256xf32> to vector<4x64xf32>
    %173 = vector.extract_strided_slice %170 {offsets = [0, 128], sizes = [4, 64], strides = [1, 1]} : vector<4x256xf32> to vector<4x64xf32>
    %174 = vector.extract_strided_slice %170 {offsets = [0, 192], sizes = [4, 64], strides = [1, 1]} : vector<4x256xf32> to vector<4x64xf32>
    %175 = arith.mulf %172, %156 : vector<4x64xf32>
    %176 = arith.mulf %171, %174 : vector<4x64xf32>
    %177 = arith.addf %175, %176 : vector<4x64xf32>
    %178 = math.tanh %177 : vector<4x64xf32>
    %179 = arith.mulf %173, %178 : vector<4x64xf32>
    %180 = vector.extract_strided_slice %179 {offsets = [0, 32], sizes = [4, 32], strides = [1, 1]} : vector<4x64xf32> to vector<4x32xf32>
    %cst_25 = arith.constant dense<0.000000e+00> : vector<4x256xf32>
    %181 = tpu.matmul %179, %67, %cst_25 {dimension_numbers = #tpu.dot_dimension_numbers<[1], [0], [0], [1], [0, 0, 1, 1], [], []>} : vector<4x64xf32>, vector<64x256xf32>, vector<4x256xf32> -> vector<4x256xf32>
    %182 = vector.extract_strided_slice %66 {offsets = [5, 0, 0], sizes = [1, 4, 256], strides = [1, 1, 1]} : vector<10x4x256xf32> to vector<1x4x256xf32>
    %183 = vector.shape_cast %182 : vector<1x4x256xf32> to vector<4x256xf32>
    %184 = arith.addf %181, %183 : vector<4x256xf32>
    %185 = math.tanh %184 : vector<4x256xf32>
    %186 = arith.negf %184 : vector<4x256xf32>
    %187 = math.exp %186 : vector<4x256xf32>
    %cst_26 = arith.constant 1.000000e+00 : f32
    %188 = vector.broadcast %cst_26 : f32 to vector<4x256xf32>
    %189 = arith.addf %188, %187 : vector<4x256xf32>
    %190 = arith.divf %188, %189 : vector<4x256xf32>
    %191 = arith.select %70, %185, %190 : vector<4x256xi1>, vector<4x256xf32>
    %192 = vector.extract_strided_slice %191 {offsets = [0, 0], sizes = [4, 64], strides = [1, 1]} : vector<4x256xf32> to vector<4x64xf32>
    %193 = vector.extract_strided_slice %191 {offsets = [0, 64], sizes = [4, 64], strides = [1, 1]} : vector<4x256xf32> to vector<4x64xf32>
    %194 = vector.extract_strided_slice %191 {offsets = [0, 128], sizes = [4, 64], strides = [1, 1]} : vector<4x256xf32> to vector<4x64xf32>
    %195 = vector.extract_strided_slice %191 {offsets = [0, 192], sizes = [4, 64], strides = [1, 1]} : vector<4x256xf32> to vector<4x64xf32>
    %196 = arith.mulf %193, %177 : vector<4x64xf32>
    %197 = arith.mulf %192, %195 : vector<4x64xf32>
    %198 = arith.addf %196, %197 : vector<4x64xf32>
    %199 = math.tanh %198 : vector<4x64xf32>
    %200 = arith.mulf %194, %199 : vector<4x64xf32>
    %201 = vector.extract_strided_slice %200 {offsets = [0, 32], sizes = [4, 32], strides = [1, 1]} : vector<4x64xf32> to vector<4x32xf32>
    %cst_27 = arith.constant dense<0.000000e+00> : vector<4x256xf32>
    %202 = tpu.matmul %200, %67, %cst_27 {dimension_numbers = #tpu.dot_dimension_numbers<[1], [0], [0], [1], [0, 0, 1, 1], [], []>} : vector<4x64xf32>, vector<64x256xf32>, vector<4x256xf32> -> vector<4x256xf32>
    %203 = vector.extract_strided_slice %66 {offsets = [6, 0, 0], sizes = [1, 4, 256], strides = [1, 1, 1]} : vector<10x4x256xf32> to vector<1x4x256xf32>
    %204 = vector.shape_cast %203 : vector<1x4x256xf32> to vector<4x256xf32>
    %205 = arith.addf %202, %204 : vector<4x256xf32>
    %206 = math.tanh %205 : vector<4x256xf32>
    %207 = arith.negf %205 : vector<4x256xf32>
    %208 = math.exp %207 : vector<4x256xf32>
    %cst_28 = arith.constant 1.000000e+00 : f32
    %209 = vector.broadcast %cst_28 : f32 to vector<4x256xf32>
    %210 = arith.addf %209, %208 : vector<4x256xf32>
    %211 = arith.divf %209, %210 : vector<4x256xf32>
    %212 = arith.select %70, %206, %211 : vector<4x256xi1>, vector<4x256xf32>
    %213 = vector.extract_strided_slice %212 {offsets = [0, 0], sizes = [4, 64], strides = [1, 1]} : vector<4x256xf32> to vector<4x64xf32>
    %214 = vector.extract_strided_slice %212 {offsets = [0, 64], sizes = [4, 64], strides = [1, 1]} : vector<4x256xf32> to vector<4x64xf32>
    %215 = vector.extract_strided_slice %212 {offsets = [0, 128], sizes = [4, 64], strides = [1, 1]} : vector<4x256xf32> to vector<4x64xf32>
    %216 = vector.extract_strided_slice %212 {offsets = [0, 192], sizes = [4, 64], strides = [1, 1]} : vector<4x256xf32> to vector<4x64xf32>
    %217 = arith.mulf %214, %198 : vector<4x64xf32>
    %218 = arith.mulf %213, %216 : vector<4x64xf32>
    %219 = arith.addf %217, %218 : vector<4x64xf32>
    %220 = math.tanh %219 : vector<4x64xf32>
    %221 = arith.mulf %215, %220 : vector<4x64xf32>
    %222 = vector.extract_strided_slice %221 {offsets = [0, 32], sizes = [4, 32], strides = [1, 1]} : vector<4x64xf32> to vector<4x32xf32>
    %cst_29 = arith.constant dense<0.000000e+00> : vector<4x256xf32>
    %223 = tpu.matmul %221, %67, %cst_29 {dimension_numbers = #tpu.dot_dimension_numbers<[1], [0], [0], [1], [0, 0, 1, 1], [], []>} : vector<4x64xf32>, vector<64x256xf32>, vector<4x256xf32> -> vector<4x256xf32>
    %224 = vector.extract_strided_slice %66 {offsets = [7, 0, 0], sizes = [1, 4, 256], strides = [1, 1, 1]} : vector<10x4x256xf32> to vector<1x4x256xf32>
    %225 = vector.shape_cast %224 : vector<1x4x256xf32> to vector<4x256xf32>
    %226 = arith.addf %223, %225 : vector<4x256xf32>
    %227 = math.tanh %226 : vector<4x256xf32>
    %228 = arith.negf %226 : vector<4x256xf32>
    %229 = math.exp %228 : vector<4x256xf32>
    %cst_30 = arith.constant 1.000000e+00 : f32
    %230 = vector.broadcast %cst_30 : f32 to vector<4x256xf32>
    %231 = arith.addf %230, %229 : vector<4x256xf32>
    %232 = arith.divf %230, %231 : vector<4x256xf32>
    %233 = arith.select %70, %227, %232 : vector<4x256xi1>, vector<4x256xf32>
    %234 = vector.extract_strided_slice %233 {offsets = [0, 0], sizes = [4, 64], strides = [1, 1]} : vector<4x256xf32> to vector<4x64xf32>
    %235 = vector.extract_strided_slice %233 {offsets = [0, 64], sizes = [4, 64], strides = [1, 1]} : vector<4x256xf32> to vector<4x64xf32>
    %236 = vector.extract_strided_slice %233 {offsets = [0, 128], sizes = [4, 64], strides = [1, 1]} : vector<4x256xf32> to vector<4x64xf32>
    %237 = vector.extract_strided_slice %233 {offsets = [0, 192], sizes = [4, 64], strides = [1, 1]} : vector<4x256xf32> to vector<4x64xf32>
    %238 = arith.mulf %235, %219 : vector<4x64xf32>
    %239 = arith.mulf %234, %237 : vector<4x64xf32>
    %240 = arith.addf %238, %239 : vector<4x64xf32>
    %241 = math.tanh %240 : vector<4x64xf32>
    %242 = arith.mulf %236, %241 : vector<4x64xf32>
    %243 = vector.extract_strided_slice %242 {offsets = [0, 32], sizes = [4, 32], strides = [1, 1]} : vector<4x64xf32> to vector<4x32xf32>
    %cst_31 = arith.constant dense<0.000000e+00> : vector<4x256xf32>
    %244 = tpu.matmul %242, %67, %cst_31 {dimension_numbers = #tpu.dot_dimension_numbers<[1], [0], [0], [1], [0, 0, 1, 1], [], []>} : vector<4x64xf32>, vector<64x256xf32>, vector<4x256xf32> -> vector<4x256xf32>
    %245 = vector.extract_strided_slice %66 {offsets = [8, 0, 0], sizes = [1, 4, 256], strides = [1, 1, 1]} : vector<10x4x256xf32> to vector<1x4x256xf32>
    %246 = vector.shape_cast %245 : vector<1x4x256xf32> to vector<4x256xf32>
    %247 = arith.addf %244, %246 : vector<4x256xf32>
    %248 = math.tanh %247 : vector<4x256xf32>
    %249 = arith.negf %247 : vector<4x256xf32>
    %250 = math.exp %249 : vector<4x256xf32>
    %cst_32 = arith.constant 1.000000e+00 : f32
    %251 = vector.broadcast %cst_32 : f32 to vector<4x256xf32>
    %252 = arith.addf %251, %250 : vector<4x256xf32>
    %253 = arith.divf %251, %252 : vector<4x256xf32>
    %254 = arith.select %70, %248, %253 : vector<4x256xi1>, vector<4x256xf32>
    %255 = vector.extract_strided_slice %254 {offsets = [0, 0], sizes = [4, 64], strides = [1, 1]} : vector<4x256xf32> to vector<4x64xf32>
    %256 = vector.extract_strided_slice %254 {offsets = [0, 64], sizes = [4, 64], strides = [1, 1]} : vector<4x256xf32> to vector<4x64xf32>
    %257 = vector.extract_strided_slice %254 {offsets = [0, 128], sizes = [4, 64], strides = [1, 1]} : vector<4x256xf32> to vector<4x64xf32>
    %258 = vector.extract_strided_slice %254 {offsets = [0, 192], sizes = [4, 64], strides = [1, 1]} : vector<4x256xf32> to vector<4x64xf32>
    %259 = arith.mulf %256, %240 : vector<4x64xf32>
    %260 = arith.mulf %255, %258 : vector<4x64xf32>
    %261 = arith.addf %259, %260 : vector<4x64xf32>
    %262 = math.tanh %261 : vector<4x64xf32>
    %263 = arith.mulf %257, %262 : vector<4x64xf32>
    %264 = vector.extract_strided_slice %263 {offsets = [0, 32], sizes = [4, 32], strides = [1, 1]} : vector<4x64xf32> to vector<4x32xf32>
    %cst_33 = arith.constant dense<0.000000e+00> : vector<4x256xf32>
    %265 = tpu.matmul %263, %67, %cst_33 {dimension_numbers = #tpu.dot_dimension_numbers<[1], [0], [0], [1], [0, 0, 1, 1], [], []>} : vector<4x64xf32>, vector<64x256xf32>, vector<4x256xf32> -> vector<4x256xf32>
    %266 = vector.extract_strided_slice %66 {offsets = [9, 0, 0], sizes = [1, 4, 256], strides = [1, 1, 1]} : vector<10x4x256xf32> to vector<1x4x256xf32>
    %267 = vector.shape_cast %266 : vector<1x4x256xf32> to vector<4x256xf32>
    %268 = arith.addf %265, %267 : vector<4x256xf32>
    %269 = math.tanh %268 : vector<4x256xf32>
    %270 = arith.negf %268 : vector<4x256xf32>
    %271 = math.exp %270 : vector<4x256xf32>
    %cst_34 = arith.constant 1.000000e+00 : f32
    %272 = vector.broadcast %cst_34 : f32 to vector<4x256xf32>
    %273 = arith.addf %272, %271 : vector<4x256xf32>
    %274 = arith.divf %272, %273 : vector<4x256xf32>
    %275 = arith.select %70, %269, %274 : vector<4x256xi1>, vector<4x256xf32>
    %276 = vector.extract_strided_slice %275 {offsets = [0, 0], sizes = [4, 64], strides = [1, 1]} : vector<4x256xf32> to vector<4x64xf32>
    %277 = vector.extract_strided_slice %275 {offsets = [0, 64], sizes = [4, 64], strides = [1, 1]} : vector<4x256xf32> to vector<4x64xf32>
    %278 = vector.extract_strided_slice %275 {offsets = [0, 128], sizes = [4, 64], strides = [1, 1]} : vector<4x256xf32> to vector<4x64xf32>
    %279 = vector.extract_strided_slice %275 {offsets = [0, 192], sizes = [4, 64], strides = [1, 1]} : vector<4x256xf32> to vector<4x64xf32>
    %280 = arith.mulf %277, %261 : vector<4x64xf32>
    %281 = arith.mulf %276, %279 : vector<4x64xf32>
    %282 = arith.addf %280, %281 : vector<4x64xf32>
    %283 = math.tanh %282 : vector<4x64xf32>
    %284 = arith.mulf %278, %283 : vector<4x64xf32>
    %285 = vector.extract_strided_slice %284 {offsets = [0, 32], sizes = [4, 32], strides = [1, 1]} : vector<4x64xf32> to vector<4x32xf32>
    %286 = tpu.concatenate %117, %138, %159, %180, %201, %222, %243, %264, %285 in 0 : vector<4x32xf32>, vector<4x32xf32>, vector<4x32xf32>, vector<4x32xf32>, vector<4x32xf32>, vector<4x32xf32>, vector<4x32xf32>, vector<4x32xf32>, vector<4x32xf32> -> vector<36x32xf32>
    %c0_35 = arith.constant 0 : index
    %c0_36 = arith.constant 0 : index
    %287 = vector.load %arg7[%c0_35, %c0_36] : memref<32x128xf32, #tpu.memory_space<vmem>>, vector<32x128xf32>
    %cst_37 = arith.constant dense<0.000000e+00> : vector<36x128xf32>
    %288 = tpu.matmul %286, %287, %cst_37 {dimension_numbers = #tpu.dot_dimension_numbers<[1], [0], [0], [1], [0, 0, 1, 1], [], []>} : vector<36x32xf32>, vector<32x128xf32>, vector<36x128xf32> -> vector<36x128xf32>
    %c0_38 = arith.constant 0 : index
    %c0_39 = arith.constant 0 : index
    %289 = vector.load %arg8[%c0_38, %c0_39] : memref<1x128xf32, #tpu.memory_space<vmem>>, vector<1x128xf32>
    %290 = vector.broadcast %289 : vector<1x128xf32> to vector<36x128xf32>
    %291 = arith.addf %288, %290 : vector<36x128xf32>
    %c0_40 = arith.constant 0 : index
    %c0_41 = arith.constant 0 : index
    %292 = vector.load %arg9[%c0_40, %c0_41] : memref<36x128xf32, #tpu.memory_space<vmem>>, vector<36x128xf32>
    tpu.vector_store %arg9[%c0_40, %c0_41], %291 {strides = array<i32>} : memref<36x128xf32, #tpu.memory_space<vmem>>, vector<36x128xf32>,
    return
  }
}

</mosaic_0001>

<llo_original>
// kernel: tpu_custom_call.1
$region0: #{tpu_custom_call.1}
  #allocation0 [shape = 'u32[]', space=smem, size = 0x4, offset = 0x4, fixed_abs, tag = 'smem constant byte address 0x4 - core index']
  #allocation1 [shape = 'u32[144,128]{1,0:T(1,128)}', space=vmem, size = 0x12000, scoped, tag = 'internal scratch']
  %s0 = inlined_call_operand.vmem [shape: f32[4,32], index: 0, kind: input, shape index: {}]
  %s1 = inlined_call_operand.vmem [shape: s32[32,1], index: 1, kind: input, shape index: {}]
  %s2 = inlined_call_operand.hbm [shape: f32[128,128], index: 2, kind: input, shape index: {}]
  %s3 = inlined_call_operand.vmem [shape: f32[32,128], index: 3, kind: input, shape index: {}]
  %s4 = inlined_call_operand.vmem [shape: f32[1,128], index: 4, kind: input, shape index: {}]
  %s5 = inlined_call_operand.vmem [shape: f32[1,128], index: 5, kind: input, shape index: {}]
  %s6 = inlined_call_operand.hbm [shape: f32[64,256], index: 6, kind: input, shape index: {}]
  %s7 = inlined_call_operand.hbm [shape: f32[32,128], index: 7, kind: input, shape index: {}]
  %s8 = inlined_call_operand.vmem [shape: f32[1,128], index: 8, kind: input, shape index: {}]
  %s9 = inlined_call_operand.hbm [shape: f32[36,128], index: 9, kind: output, shape index: {}]
  %s10 = sld [smem:[#allocation0]]
  $region58: #{tpu_custom_call.1} parent=0
    _
  %s12 = ssub.s32 1, %s10
  %s13 = scalar_select 0, %s12, %s10
  $region1: #{tpu_custom_call.1} parent=0
    #allocation2 [shape = 'u8[65536]{0}', space=vmem, size = 0x10000, scoped, tag = 'input window, operand 2, single buffered']
    #allocation3 [shape = 's32[1]{0}', space=sflag, size = 0x4, scoped, tag = 'scoped memory for tpu_custom_call.1']
    #allocation4 [shape = 's32[1]{0}', space=sflag, size = 0x4, scoped, tag = 'scoped memory for tpu_custom_call.1']
    #allocation5 [shape = 'u8[65536]{0}', space=vmem, size = 0x10000, scoped, tag = 'input window, operand 6, single buffered']
    #allocation6 [shape = 's32[1]{0}', space=sflag, size = 0x4, scoped, tag = 'scoped memory for tpu_custom_call.1']
    #allocation7 [shape = 'u8[16384]{0}', space=vmem, size = 0x4000, scoped, tag = 'input window, operand 7, single buffered']
    #allocation8 [shape = 'u8[20480]{0}', space=vmem, size = 0x5000, scoped, tag = 'output window, operand 0, single buffered']
    %14 = vsyncpa [#allocation3], 0
    %15 = vsyncpa [#allocation6], 0
    %16 = vsyncpa [#allocation4], 0
    // Predicated region
    $region2: #{tpu_custom_call.1} parent=1 // pred_check
      _
    $region3: #{tpu_custom_call.1} parent=1 // pred_check_branch
      %18 = sbr.rel (0) target = $region5
    $region4: #{tpu_custom_call.1} parent=1 // pred_region
      _
    $region5: #{tpu_custom_call.1} parent=1 // pred_fallthru
      _
    // Predicated region
    $region6: #{tpu_custom_call.1} parent=1 // pred_check
      _
    $region7: #{tpu_custom_call.1} parent=1 // pred_check_branch
      %20 = sbr.rel (0) target = $region9
    $region8: #{tpu_custom_call.1} parent=1 // pred_region
      _
    $region9: #{tpu_custom_call.1} parent=1 // pred_fallthru
      _
    // Predicated region
    $region10: #{tpu_custom_call.1} parent=1 // pred_check
      _
    $region11: #{tpu_custom_call.1} parent=1 // pred_check_branch
      %22 = sbr.rel (0) target = $region13
    $region12: #{tpu_custom_call.1} parent=1 // pred_region
      %s24 = ssub.s32 2048, 2048
      %25 = vsyncadd [#allocation3], %s24
      %s26 = sshll.u32 [#allocation2], 4
      %s27 = int_to_ptr.vmem [resolvable:$true] %s26
      %32 = dma.hbm_to_vmem [thread:$0]  %s2, 2048, %s27, [#allocation3], 128, 128, 8
    $region13: #{tpu_custom_call.1} parent=1 // pred_fallthru
      _
    // Predicated region
    $region14: #{tpu_custom_call.1} parent=1 // pred_check
      _
    $region15: #{tpu_custom_call.1} parent=1 // pred_check_branch
      %34 = sbr.rel (0) target = $region17
    $region16: #{tpu_custom_call.1} parent=1 // pred_region
      _
    $region17: #{tpu_custom_call.1} parent=1 // pred_fallthru
      _
    // Predicated region
    $region18: #{tpu_custom_call.1} parent=1 // pred_check
      _
    $region19: #{tpu_custom_call.1} parent=1 // pred_check_branch
      %36 = sbr.rel (0) target = $region21
    $region20: #{tpu_custom_call.1} parent=1 // pred_region
      _
    $region21: #{tpu_custom_call.1} parent=1 // pred_fallthru
      _
    // Predicated region
    $region22: #{tpu_custom_call.1} parent=1 // pred_check
      _
    $region23: #{tpu_custom_call.1} parent=1 // pred_check_branch
      %38 = sbr.rel (0) target = $region25
    $region24: #{tpu_custom_call.1} parent=1 // pred_region
      _
    $region25: #{tpu_custom_call.1} parent=1 // pred_fallthru
      _
    // Predicated region
    $region26: #{tpu_custom_call.1} parent=1 // pred_check
      _
    $region27: #{tpu_custom_call.1} parent=1 // pred_check_branch
      %40 = sbr.rel (0) target = $region29
    $region28: #{tpu_custom_call.1} parent=1 // pred_region
      %s42 = ssub.s32 2048, 2048
      %43 = vsyncadd [#allocation6], %s42
      %s44 = sshll.u32 [#allocation5], 4
      %s45 = int_to_ptr.vmem [resolvable:$true] %s44
      %50 = dma.hbm_to_vmem [thread:$0]  %s6, 2048, %s45, [#allocation6], 256, 256, 16
    $region29: #{tpu_custom_call.1} parent=1 // pred_fallthru
      _
    // Predicated region
    $region30: #{tpu_custom_call.1} parent=1 // pred_check
      _
    $region31: #{tpu_custom_call.1} parent=1 // pred_check_branch
      %52 = sbr.rel (0) target = $region33
    $region32: #{tpu_custom_call.1} parent=1 // pred_region
      %s54 = ssub.s32 512, 512
      %55 = vsyncadd [#allocation6], %s54
      %s56 = sshll.u32 [#allocation7], 4
      %s57 = int_to_ptr.vmem [resolvable:$true] %s56
      %62 = dma.hbm_to_vmem [thread:$0]  %s7, 512, %s57, [#allocation6], 128, 128, 8
    $region33: #{tpu_custom_call.1} parent=1 // pred_fallthru
      _
    // Predicated region
    $region34: #{tpu_custom_call.1} parent=1 // pred_check
      _
    $region35: #{tpu_custom_call.1} parent=1 // pred_check_branch
      %64 = sbr.rel (0) target = $region37
    $region36: #{tpu_custom_call.1} parent=1 // pred_region
      _
    $region37: #{tpu_custom_call.1} parent=1 // pred_fallthru
      _
    // Predicated region
    $region38: #{tpu_custom_call.1} parent=1 // pred_check
      _
    $region39: #{tpu_custom_call.1} parent=1 // pred_check_branch
      %66 = sbr.rel (0) target = $region41
    $region40: #{tpu_custom_call.1} parent=1 // pred_region
      %67 = dma.done [#allocation3], 2048
    $region41: #{tpu_custom_call.1} parent=1 // pred_fallthru
      _
    // Predicated region
    $region42: #{tpu_custom_call.1} parent=1 // pred_check
      _
    $region43: #{tpu_custom_call.1} parent=1 // pred_check_branch
      %69 = sbr.rel (0) target = $region45
    $region44: #{tpu_custom_call.1} parent=1 // pred_region
      %70 = dma.done [#allocation6], 2048
    $region45: #{tpu_custom_call.1} parent=1 // pred_fallthru
      _
    // Predicated region
    $region46: #{tpu_custom_call.1} parent=1 // pred_check
      _
    $region47: #{tpu_custom_call.1} parent=1 // pred_check_branch
      %72 = sbr.rel (0) target = $region49
    $region48: #{tpu_custom_call.1} parent=1 // pred_region
      %73 = dma.done [#allocation6], 512
    $region49: #{tpu_custom_call.1} parent=1 // pred_fallthru
      _
    %v74 = vld [vmem:[%s4] sm:$0x1]
    %v75 = vld [vmem:[%s0] sm:$0xf]
    %v76 = vld [vmem:[%s3] sm:$0xff]
    %v77 = vld [vmem:[%s3 + $0x8] sm:$0xff]
    %v78 = vld [vmem:[%s3 + $0x10] sm:$0xff]
    %v79 = vld [vmem:[%s3 + $0x18] sm:$0xff]
    %v81 = vlaneseq
    %v82 = vshrl.u32 %v81, 7
    %v83 = vsub.s32 0, %v82
    %v84 = vrot.slane %v74, %v83
    %vm86 = vcmask 261120
    %v88 = vsel %vm86, %v75, 0
    %90 = vmatprep.subr.mxu0 0.0
    %91 = vmatpush1.msra.mxu0 0.0
    %92 = vmatprep.subr.mxu0 0.0
    %93 = vmatpush1.msra.mxu0 0.0
    %94 = vmatprep.subr.mxu0 0.0
    %95 = vmatpush1.msra.mxu0 0.0
    %96 = vmatprep.subr.mxu0 0.0
    %97 = vmatpush1.msra.mxu0 0.0
    %98 = vmatprep.subr.mxu0 0.0
    %99 = vmatpush1.msra.mxu0 0.0
    %100 = vmatprep.subr.mxu0 0.0
    %101 = vmatpush1.msra.mxu0 0.0
    %102 = vmatprep.subr.mxu0 0.0
    %103 = vmatpush1.msra.mxu0 0.0
    %104 = vmatprep.subr.mxu0 0.0
    %105 = vmatpush1.msra.mxu0 0.0
    %106 = vmatprep.subr.mxu0 0.0
    %107 = vmatpush1.msra.mxu0 0.0
    %108 = vmatprep.subr.mxu0 0.0
    %109 = vmatpush1.msra.mxu0 0.0
    %110 = vmatprep.subr.mxu0 0.0
    %111 = vmatpush1.msra.mxu0 0.0
    %112 = vmatprep.subr.mxu0 0.0
    %113 = vmatpush1.msra.mxu0 0.0
    %114 = vmatprep.subr.mxu0 0.0
    %115 = vmatpush1.msra.mxu0 %v79
    %116 = vmatprep.subr.mxu0 0.0
    %117 = vmatpush1.msra.mxu0 %v78
    %118 = vmatprep.subr.mxu0 0.0
    %119 = vmatpush1.msra.mxu0 %v77
    %120 = vmatprep.subr.mxu0 0.0
    %121 = vmatpush1.msra.mxu0 %v76
    %122 = vmatprep.subr.mxu0 0.0
    %123 = vmatpush2.msra.mxu0 0.0
    %124 = vmatprep.subr.mxu0 0.0
    %125 = vmatpush2.msra.mxu0 0.0
    %126 = vmatprep.subr.mxu0 0.0
    %127 = vmatpush2.msra.mxu0 0.0
    %128 = vmatprep.subr.mxu0 0.0
    %129 = vmatpush2.msra.mxu0 0.0
    %130 = vmatprep.subr.mxu0 0.0
    %131 = vmatpush2.msra.mxu0 0.0
    %132 = vmatprep.subr.mxu0 0.0
    %133 = vmatpush2.msra.mxu0 0.0
    %134 = vmatprep.subr.mxu0 0.0
    %135 = vmatpush2.msra.mxu0 0.0
    %136 = vmatprep.subr.mxu0 0.0
    %137 = vmatpush2.msra.mxu0 0.0
    %138 = vmatprep.subr.mxu0 0.0
    %139 = vmatpush2.msra.mxu0 0.0
    %140 = vmatprep.subr.mxu0 0.0
    %141 = vmatpush2.msra.mxu0 0.0
    %142 = vmatprep.subr.mxu0 0.0
    %143 = vmatpush2.msra.mxu0 0.0
    %144 = vmatprep.subr.mxu0 0.0
    %145 = vmatpush2.msra.mxu0 0.0
    %146 = vmatprep.subr.mxu0 0.0
    %147 = vmatpush2.msra.mxu0 0.0
    %148 = vmatprep.subr.mxu0 0.0
    %149 = vmatpush2.msra.mxu0 0.0
    %150 = vmatprep.subr.mxu0 0.0
    %151 = vmatpush2.msra.mxu0 0.0
    %152 = vmatprep.subr.mxu0 0.0
    %153 = vmatpush2.msra.mxu0 0.0
    %154 = vmatprep.mubr.f32.mxu0 0.0
    %155 = vmatmul.mubr.f32.gmra.mxu0 %v88
    %v156 = vpop.f32.mrf.mxu0
    %v157 = vadd.f32 %v84, %v156
    %v158 = vpop.f32.mrf.mxu0
    %159 = vdwg.mxu0
    %v160 = vld [vmem:[%s1] sm:$0xff]
    %v161 = vld [vmem:[%s1 + $0x8] sm:$0xff]
    %v162 = vld [vmem:[%s1 + $0x10] sm:$0xff]
    %v163 = vld [vmem:[%s1 + $0x18] sm:$0xff]
    %v164 = vlaneseq
    %v165 = vand.u32 %v164, 127
    %166 = vset.pattern.permute.xlu0 0
    %167 = vperm.xlu0 %166, %v160
    %v168 = vpop.permute.xlu0 %167
    %169 = vset.pattern.permute.xlu0 0
    %170 = vperm.xlu0 %169, %v161
    %v171 = vpop.permute.xlu0 %170
    %172 = vset.pattern.permute.xlu0 0
    %173 = vperm.xlu0 %172, %v162
    %v174 = vpop.permute.xlu0 %173
    %175 = vset.pattern.permute.xlu0 0
    %176 = vperm.xlu0 %175, %v163
    %v177 = vpop.permute.xlu0 %176
    %vm178 = vcmp.eq.s32.totalorder %v168, %v165
    %vm179 = vcmp.eq.s32.totalorder %v171, %v165
    %vm180 = vcmp.eq.s32.totalorder %v174, %v165
    %vm181 = vcmp.eq.s32.totalorder %v177, %v165
    %v182 = vsel %vm178, 1, 0
    %v183 = vsel %vm179, 1, 0
    %v184 = vsel %vm180, 1, 0
    %v185 = vsel %vm181, 1, 0
    %v186 = vcvt.s32.f32 %v182
    %v187 = vcvt.s32.f32 %v183
    %v188 = vcvt.s32.f32 %v184
    %v189 = vcvt.s32.f32 %v185
    %v190 = vld [vmem:[#allocation2] sm:$0xff]
    %v191 = vld [vmem:[#allocation2 + $0x8] sm:$0xff]
    %v192 = vld [vmem:[#allocation2 + $0x10] sm:$0xff]
    %v193 = vld [vmem:[#allocation2 + $0x18] sm:$0xff]
    %v194 = vld [vmem:[#allocation2 + $0x20] sm:$0xff]
    %v195 = vld [vmem:[#allocation2 + $0x28] sm:$0xff]
    %v196 = vld [vmem:[#allocation2 + $0x30] sm:$0xff]
    %v197 = vld [vmem:[#allocation2 + $0x38] sm:$0xff]
    %v198 = vld [vmem:[#allocation2 + $0x40] sm:$0xff]
    %v199 = vld [vmem:[#allocation2 + $0x48] sm:$0xff]
    %v200 = vld [vmem:[#allocation2 + $0x50] sm:$0xff]
    %v201 = vld [vmem:[#allocation2 + $0x58] sm:$0xff]
    %v202 = vld [vmem:[#allocation2 + $0x60] sm:$0xff]
    %v203 = vld [vmem:[#allocation2 + $0x68] sm:$0xff]
    %v204 = vld [vmem:[#allocation2 + $0x70] sm:$0xff]
    %v205 = vld [vmem:[#allocation2 + $0x78] sm:$0xff]
    %206 = vmatprep.subr.mxu0 0.0
    %207 = vmatpush1.msra.mxu0 %v205
    %208 = vmatprep.subr.mxu0 0.0
    %209 = vmatpush1.msra.mxu0 %v204
    %210 = vmatprep.subr.mxu0 0.0
    %211 = vmatpush1.msra.mxu0 %v203
    %212 = vmatprep.subr.mxu0 0.0
    %213 = vmatpush1.msra.mxu0 %v202
    %214 = vmatprep.subr.mxu0 0.0
    %215 = vmatpush1.msra.mxu0 %v201
    %216 = vmatprep.subr.mxu0 0.0
    %217 = vmatpush1.msra.mxu0 %v200
    %218 = vmatprep.subr.mxu0 0.0
    %219 = vmatpush1.msra.mxu0 %v199
    %220 = vmatprep.subr.mxu0 0.0
    %221 = vmatpush1.msra.mxu0 %v198
    %222 = vmatprep.subr.mxu0 0.0
    %223 = vmatpush1.msra.mxu0 %v197
    %224 = vmatprep.subr.mxu0 0.0
    %225 = vmatpush1.msra.mxu0 %v196
    %226 = vmatprep.subr.mxu0 0.0
    %227 = vmatpush1.msra.mxu0 %v195
    %228 = vmatprep.subr.mxu0 0.0
    %229 = vmatpush1.msra.mxu0 %v194
    %230 = vmatprep.subr.mxu0 0.0
    %231 = vmatpush1.msra.mxu0 %v193
    %232 = vmatprep.subr.mxu0 0.0
    %233 = vmatpush1.msra.mxu0 %v192
    %234 = vmatprep.subr.mxu0 0.0
    %235 = vmatpush1.msra.mxu0 %v191
    %236 = vmatprep.subr.mxu0 0.0
    %237 = vmatpush1.msra.mxu0 %v190
    %238 = vmatprep.subr.mxu0 0.0
    %239 = vmatpush2.msra.mxu0 0.0
    %240 = vmatprep.subr.mxu0 0.0
    %241 = vmatpush2.msra.mxu0 0.0
    %242 = vmatprep.subr.mxu0 0.0
    %243 = vmatpush2.msra.mxu0 0.0
    %244 = vmatprep.subr.mxu0 0.0
    %245 = vmatpush2.msra.mxu0 0.0
    %246 = vmatprep.subr.mxu0 0.0
    %247 = vmatpush2.msra.mxu0 0.0
    %248 = vmatprep.subr.mxu0 0.0
    %249 = vmatpush2.msra.mxu0 0.0
    %250 = vmatprep.subr.mxu0 0.0
    %251 = vmatpush2.msra.mxu0 0.0
    %252 = vmatprep.subr.mxu0 0.0
    %253 = vmatpush2.msra.mxu0 0.0
    %254 = vmatprep.subr.mxu0 0.0
    %255 = vmatpush2.msra.mxu0 0.0
    %256 = vmatprep.subr.mxu0 0.0
    %257 = vmatpush2.msra.mxu0 0.0
    %258 = vmatprep.subr.mxu0 0.0
    %259 = vmatpush2.msra.mxu0 0.0
    %260 = vmatprep.subr.mxu0 0.0
    %261 = vmatpush2.msra.mxu0 0.0
    %262 = vmatprep.subr.mxu0 0.0
    %263 = vmatpush2.msra.mxu0 0.0
    %264 = vmatprep.subr.mxu0 0.0
    %265 = vmatpush2.msra.mxu0 0.0
    %266 = vmatprep.subr.mxu0 0.0
    %267 = vmatpush2.msra.mxu0 0.0
    %268 = vmatprep.subr.mxu0 0.0
    %269 = vmatpush2.msra.mxu0 0.0
    %270 = vmatprep.mubr.f32.mxu0 0.0
    %271 = vmatmul.mubr.f32.gmra.mxu0 %v186
    %v272 = vpop.f32.mrf.mxu0
    %v273 = vadd.f32 %v84, %v272
    %v274 = vpop.f32.mrf.mxu0
    %275 = vmatprep.mubr.f32.mxu0 0.0
    %276 = vmatmul.mubr.f32.gmra.mxu0 %v187
    %v277 = vpop.f32.mrf.mxu0
    %v278 = vadd.f32 %v84, %v277
    %v279 = vpop.f32.mrf.mxu0
    %280 = vmatprep.mubr.f32.mxu0 0.0
    %281 = vmatmul.mubr.f32.gmra.mxu0 %v188
    %v282 = vpop.f32.mrf.mxu0
    %v283 = vadd.f32 %v84, %v282
    %v284 = vpop.f32.mrf.mxu0
    %285 = vmatprep.mubr.f32.mxu0 0.0
    %286 = vmatmul.mubr.f32.gmra.mxu0 %v189
    %v287 = vpop.f32.mrf.mxu0
    %v288 = vadd.f32 %v84, %v287
    %v289 = vpop.f32.mrf.mxu0
    %290 = vdwg.mxu0
    %v295 = vrot.slane %v278, 7
    %vm296 = vcmask 1041409
    %v297 = vsel %vm296, %v295, %v273
    %v298 = vrot.slane %v283, 6
    %vm299 = vcmask 1042434
    %v300 = vsel %vm299, %v298, %v297
    %v301 = vrot.slane %v288, 5
    %vm302 = vcmask 1043459
    %v303 = vsel %vm302, %v301, %v300
    %v305 = vrot.slane %v273, 1
    %v306 = vsel %vm296, %v278, %v305
    %v307 = vrot.slane %v283, 7
    %v308 = vsel %vm299, %v307, %v306
    %v309 = vrot.slane %v288, 6
    %v310 = vsel %vm302, %v309, %v308
    %v312 = vrot.slane %v273, 2
    %v313 = vrot.slane %v278, 1
    %v314 = vsel %vm296, %v313, %v312
    %v315 = vsel %vm299, %v283, %v314
    %v316 = vrot.slane %v288, 7
    %v317 = vsel %vm302, %v316, %v315
    %v319 = vrot.slane %v273, 3
    %v320 = vrot.slane %v278, 2
    %v321 = vsel %vm296, %v320, %v319
    %v322 = vrot.slane %v283, 1
    %v323 = vsel %vm299, %v322, %v321
    %v324 = vsel %vm302, %v288, %v323
    %v326 = vrot.slane %v273, 4
    %v327 = vrot.slane %v278, 3
    %v328 = vsel %vm296, %v327, %v326
    %v329 = vrot.slane %v283, 2
    %v330 = vsel %vm299, %v329, %v328
    %v331 = vrot.slane %v288, 1
    %v332 = vsel %vm302, %v331, %v330
    %v334 = vrot.slane %v273, 5
    %v335 = vrot.slane %v278, 4
    %v336 = vsel %vm296, %v335, %v334
    %v337 = vrot.slane %v283, 3
    %v338 = vsel %vm299, %v337, %v336
    %v339 = vrot.slane %v288, 2
    %v340 = vsel %vm302, %v339, %v338
    %v342 = vrot.slane %v273, 6
    %v343 = vrot.slane %v278, 5
    %v344 = vsel %vm296, %v343, %v342
    %v345 = vrot.slane %v283, 4
    %v346 = vsel %vm299, %v345, %v344
    %v347 = vrot.slane %v288, 3
    %v348 = vsel %vm302, %v347, %v346
    %v350 = vrot.slane %v273, 7
    %v351 = vrot.slane %v278, 6
    %v352 = vsel %vm296, %v351, %v350
    %v353 = vrot.slane %v283, 5
    %v354 = vsel %vm299, %v353, %v352
    %v355 = vrot.slane %v288, 4
    %v356 = vsel %vm302, %v355, %v354
    %v358 = vld [vmem:[%s5] sm:$0x1]
    %v360 = vlaneseq
    %v361 = vshrl.u32 %v360, 7
    %v362 = vsub.s32 0, %v361
    %v363 = vrot.slane %v358, %v362
    %365 = vrot.lane.b32.xlu0 %v363, 32
    %v366 = vpop.permute.xlu0 %365
    %370 = vrot.lane.b32.xlu0 %v157, 32
    %v371 = vpop.permute.xlu0 %370
    %372 = vrot.lane.b32.xlu0 %v303, 32
    %v373 = vpop.permute.xlu0 %372
    %374 = vrot.lane.b32.xlu0 %v310, 32
    %v375 = vpop.permute.xlu0 %374
    %376 = vrot.lane.b32.xlu0 %v317, 32
    %v377 = vpop.permute.xlu0 %376
    %378 = vrot.lane.b32.xlu0 %v324, 32
    %v379 = vpop.permute.xlu0 %378
    %380 = vrot.lane.b32.xlu0 %v332, 32
    %v381 = vpop.permute.xlu0 %380
    %382 = vrot.lane.b32.xlu0 %v340, 32
    %v383 = vpop.permute.xlu0 %382
    %384 = vrot.lane.b32.xlu0 %v348, 32
    %v385 = vpop.permute.xlu0 %384
    %386 = vrot.lane.b32.xlu0 %v356, 32
    %v387 = vpop.permute.xlu0 %386
    %388 = vrot.lane.b32.xlu0 0.0, 32
    %v389 = vpop.permute.xlu0 %388
    %400 = vrot.lane.b32.xlu0 %v363, 64
    %v401 = vpop.permute.xlu0 %400
    %403 = vrot.lane.b32.xlu0 %v157, 64
    %v404 = vpop.permute.xlu0 %403
    %405 = vrot.lane.b32.xlu0 %v303, 64
    %v406 = vpop.permute.xlu0 %405
    %407 = vrot.lane.b32.xlu0 %v310, 64
    %v408 = vpop.permute.xlu0 %407
    %409 = vrot.lane.b32.xlu0 %v317, 64
    %v410 = vpop.permute.xlu0 %409
    %411 = vrot.lane.b32.xlu0 %v324, 64
    %v412 = vpop.permute.xlu0 %411
    %413 = vrot.lane.b32.xlu0 %v332, 64
    %v414 = vpop.permute.xlu0 %413
    %415 = vrot.lane.b32.xlu0 %v340, 64
    %v416 = vpop.permute.xlu0 %415
    %417 = vrot.lane.b32.xlu0 %v348, 64
    %v418 = vpop.permute.xlu0 %417
    %419 = vrot.lane.b32.xlu0 %v356, 64
    %v420 = vpop.permute.xlu0 %419
    %421 = vrot.lane.b32.xlu0 0.0, 64
    %v422 = vpop.permute.xlu0 %421
    %433 = vrot.lane.b32.xlu0 %v363, 96
    %v434 = vpop.permute.xlu0 %433
    %436 = vrot.lane.b32.xlu0 %v157, 96
    %v437 = vpop.permute.xlu0 %436
    %438 = vrot.lane.b32.xlu0 %v303, 96
    %v439 = vpop.permute.xlu0 %438
    %440 = vrot.lane.b32.xlu0 %v310, 96
    %v441 = vpop.permute.xlu0 %440
    %442 = vrot.lane.b32.xlu0 %v317, 96
    %v443 = vpop.permute.xlu0 %442
    %444 = vrot.lane.b32.xlu0 %v324, 96
    %v445 = vpop.permute.xlu0 %444
    %446 = vrot.lane.b32.xlu0 %v332, 96
    %v447 = vpop.permute.xlu0 %446
    %448 = vrot.lane.b32.xlu0 %v340, 96
    %v449 = vpop.permute.xlu0 %448
    %450 = vrot.lane.b32.xlu0 %v348, 96
    %v451 = vpop.permute.xlu0 %450
    %452 = vrot.lane.b32.xlu0 %v356, 96
    %v453 = vpop.permute.xlu0 %452
    %454 = vrot.lane.b32.xlu0 0.0, 96
    %v455 = vpop.permute.xlu0 %454
    %v466 = vsel %vm86, %v157, %v366
    %v467 = vsel %vm86, %v303, %v366
    %v468 = vsel %vm86, %v310, %v366
    %v469 = vsel %vm86, %v317, %v366
    %v470 = vsel %vm86, %v324, %v366
    %v471 = vsel %vm86, %v332, %v366
    %v472 = vsel %vm86, %v340, %v366
    %v473 = vsel %vm86, %v348, %v366
    %v474 = vsel %vm86, %v356, %v366
    %v475 = vsel %vm86, 0.0, %v366
    %vm476 = vcmask 523264
    %v477 = vsel %vm476, %v466, %v371
    %v478 = vsel %vm476, %v467, %v373
    %v479 = vsel %vm476, %v468, %v375
    %v480 = vsel %vm476, %v469, %v377
    %v481 = vsel %vm476, %v470, %v379
    %v482 = vsel %vm476, %v471, %v381
    %v483 = vsel %vm476, %v472, %v383
    %v484 = vsel %vm476, %v473, %v385
    %v485 = vsel %vm476, %v474, %v387
    %v486 = vsel %vm476, %v475, %v389
    %vm487 = vcmask 785408
    %v488 = vsel %vm487, %v477, %v401
    %v489 = vsel %vm487, %v478, %v401
    %v490 = vsel %vm487, %v479, %v401
    %v491 = vsel %vm487, %v480, %v401
    %v492 = vsel %vm487, %v481, %v401
    %v493 = vsel %vm487, %v482, %v401
    %v494 = vsel %vm487, %v483, %v401
    %v495 = vsel %vm487, %v484, %v401
    %v496 = vsel %vm487, %v485, %v401
    %v497 = vsel %vm487, %v486, %v401
    %v498 = vsel %vm86, %v404, %v434
    %v499 = vsel %vm86, %v406, %v434
    %v500 = vsel %vm86, %v408, %v434
    %v501 = vsel %vm86, %v410, %v434
    %v502 = vsel %vm86, %v412, %v434
    %v503 = vsel %vm86, %v414, %v434
    %v504 = vsel %vm86, %v416, %v434
    %v505 = vsel %vm86, %v418, %v434
    %v506 = vsel %vm86, %v420, %v434
    %v507 = vsel %vm86, %v422, %v434
    %v508 = vsel %vm476, %v498, %v437
    %v509 = vsel %vm476, %v499, %v439
    %v510 = vsel %vm476, %v500, %v441
    %v511 = vsel %vm476, %v501, %v443
    %v512 = vsel %vm476, %v502, %v445
    %v513 = vsel %vm476, %v503, %v447
    %v514 = vsel %vm476, %v504, %v449
    %v515 = vsel %vm476, %v505, %v451
    %v516 = vsel %vm476, %v506, %v453
    %v517 = vsel %vm476, %v507, %v455
    %v518 = vsel %vm487, %v508, %v363
    %v519 = vsel %vm487, %v509, %v363
    %v520 = vsel %vm487, %v510, %v363
    %v521 = vsel %vm487, %v511, %v363
    %v522 = vsel %vm487, %v512, %v363
    %v523 = vsel %vm487, %v513, %v363
    %v524 = vsel %vm487, %v514, %v363
    %v525 = vsel %vm487, %v515, %v363
    %v526 = vsel %vm487, %v516, %v363
    %v527 = vsel %vm487, %v517, %v363
    %v528 = vld [vmem:[#allocation5] sm:$0xff]
    %v529 = vld [vmem:[#allocation5 + $0x8] sm:$0xff]
    %v530 = vld [vmem:[#allocation5 + $0x10] sm:$0xff]
    %v531 = vld [vmem:[#allocation5 + $0x18] sm:$0xff]
    %v532 = vld [vmem:[#allocation5 + $0x20] sm:$0xff]
    %v533 = vld [vmem:[#allocation5 + $0x28] sm:$0xff]
    %v534 = vld [vmem:[#allocation5 + $0x30] sm:$0xff]
    %v535 = vld [vmem:[#allocation5 + $0x38] sm:$0xff]
    %v536 = vld [vmem:[#allocation5 + $0x40] sm:$0xff]
    %v537 = vld [vmem:[#allocation5 + $0x48] sm:$0xff]
    %v538 = vld [vmem:[#allocation5 + $0x50] sm:$0xff]
    %v539 = vld [vmem:[#allocation5 + $0x58] sm:$0xff]
    %v540 = vld [vmem:[#allocation5 + $0x60] sm:$0xff]
    %v541 = vld [vmem:[#allocation5 + $0x68] sm:$0xff]
    %v542 = vld [vmem:[#allocation5 + $0x70] sm:$0xff]
    %v543 = vld [vmem:[#allocation5 + $0x78] sm:$0xff]
    %v544 = vadd.s32 %v165, 128
    %vm545 = vcmp.ge.s32.totalorder %v165, 192
    %vm546 = vcmp.ge.s32.totalorder %v544, 192
    %v547 = vtanh.pop %v488
    %v548 = vtanh.pop %v518
    %v549 = vxor.u32 %v488, 2147483648
    %v550 = vxor.u32 %v518, 2147483648
    %v551 = vmul.f32 %v549, 1.442695
    %v552 = vpow.pop %v551
    %v553 = vmul.f32 %v550, 1.442695
    %v554 = vpow.pop %v553
    %v555 = vadd.f32 %v552, 1.0
    %v556 = vadd.f32 %v554, 1.0
    %v557 = vrcp.pop %v555
    %v558 = vmul.f32 1.0, %v557
    %v559 = vrcp.pop %v556
    %v560 = vmul.f32 1.0, %v559
    %v561 = vsel %vm545, %v547, %v558
    %v562 = vsel %vm546, %v548, %v560
    %v563 = vmul.f32 %v561, 0.0
    %565 = vrot.lane.b32.xlu0 %v562, 64
    %v566 = vpop.permute.xlu0 %565
    %v568 = vmul.f32 %v561, %v566
    %570 = vrot.lane.b32.xlu0 %v568, 64
    %v571 = vpop.permute.xlu0 %570
    %v573 = vadd.f32 %v563, %v571
    %v574 = vtanh.pop %v573
    %576 = vrot.lane.b32.xlu0 %v574, 64
    %v577 = vpop.permute.xlu0 %576
    %v579 = vmul.f32 %v562, %v577
    %vm580 = vcmp.lt.s32.totalorder %v165, 32
    %v581 = vsel %vm580, 1, 0
    %v582 = vcvt.s32.f32 %v581
    %v583 = vmul.f32 %v579, %v582
    %585 = vrot.lane.b32.xlu0 %v582, 64
    %v586 = vpop.permute.xlu0 %585
    %v588 = vmul.f32 %v573, %v586
    %v590 = vsel %vm476, %v583, 0
    %592 = vmatprep.subr.mxu0 0.0
    %593 = vmatpush1.msra.mxu0 0.0
    %594 = vmatprep.subr.mxu0 0.0
    %595 = vmatpush1.msra.mxu0 0.0
    %596 = vmatprep.subr.mxu0 0.0
    %597 = vmatpush1.msra.mxu0 0.0
    %598 = vmatprep.subr.mxu0 0.0
    %599 = vmatpush1.msra.mxu0 0.0
    %600 = vmatprep.subr.mxu0 0.0
    %601 = vmatpush1.msra.mxu0 0.0
    %602 = vmatprep.subr.mxu0 0.0
    %603 = vmatpush1.msra.mxu0 0.0
    %604 = vmatprep.subr.mxu0 0.0
    %605 = vmatpush1.msra.mxu0 0.0
    %606 = vmatprep.subr.mxu0 0.0
    %607 = vmatpush1.msra.mxu0 0.0
    %608 = vmatprep.subr.mxu0 %v543
    %609 = vmatpush1.msra.mxu0 %v542
    %610 = vmatprep.subr.mxu0 %v541
    %611 = vmatpush1.msra.mxu0 %v540
    %612 = vmatprep.subr.mxu0 %v539
    %613 = vmatpush1.msra.mxu0 %v538
    %614 = vmatprep.subr.mxu0 %v537
    %615 = vmatpush1.msra.mxu0 %v536
    %616 = vmatprep.subr.mxu0 %v535
    %617 = vmatpush1.msra.mxu0 %v534
    %618 = vmatprep.subr.mxu0 %v533
    %619 = vmatpush1.msra.mxu0 %v532
    %620 = vmatprep.subr.mxu0 %v531
    %621 = vmatpush1.msra.mxu0 %v530
    %622 = vmatprep.subr.mxu0 %v529
    %623 = vmatpush1.msra.mxu0 %v528
    %624 = vmatprep.subr.mxu0 0.0
    %625 = vmatpush2.msra.mxu0 0.0
    %626 = vmatprep.subr.mxu0 0.0
    %627 = vmatpush2.msra.mxu0 0.0
    %628 = vmatprep.subr.mxu0 0.0
    %629 = vmatpush2.msra.mxu0 0.0
    %630 = vmatprep.subr.mxu0 0.0
    %631 = vmatpush2.msra.mxu0 0.0
    %632 = vmatprep.subr.mxu0 0.0
    %633 = vmatpush2.msra.mxu0 0.0
    %634 = vmatprep.subr.mxu0 0.0
    %635 = vmatpush2.msra.mxu0 0.0
    %636 = vmatprep.subr.mxu0 0.0
    %637 = vmatpush2.msra.mxu0 0.0
    %638 = vmatprep.subr.mxu0 0.0
    %639 = vmatpush2.msra.mxu0 0.0
    %640 = vmatprep.subr.mxu0 0.0
    %641 = vmatpush2.msra.mxu0 0.0
    %642 = vmatprep.subr.mxu0 0.0
    %643 = vmatpush2.msra.mxu0 0.0
    %644 = vmatprep.subr.mxu0 0.0
    %645 = vmatpush2.msra.mxu0 0.0
    %646 = vmatprep.subr.mxu0 0.0
    %647 = vmatpush2.msra.mxu0 0.0
    %648 = vmatprep.subr.mxu0 0.0
    %649 = vmatpush2.msra.mxu0 0.0
    %650 = vmatprep.subr.mxu0 0.0
    %651 = vmatpush2.msra.mxu0 0.0
    %652 = vmatprep.subr.mxu0 0.0
    %653 = vmatpush2.msra.mxu0 0.0
    %654 = vmatprep.subr.mxu0 0.0
    %655 = vmatpush2.msra.mxu0 0.0
    %656 = vmatprep.mubr.f32.mxu0 0.0
    %657 = vmatmul.mubr.f32.gmra.mxu0 %v590
    %v658 = vpop.f32.mrf.mxu0
    %v659 = vadd.f32 %v489, %v658
    %v660 = vpop.f32.mrf.mxu0
    %v661 = vadd.f32 %v519, %v660
    %662 = vdwg.mxu0
    %v663 = vtanh.pop %v659
    %v664 = vtanh.pop %v661
    %v665 = vxor.u32 %v659, 2147483648
    %v666 = vxor.u32 %v661, 2147483648
    %v667 = vmul.f32 %v665, 1.442695
    %v668 = vpow.pop %v667
    %v669 = vmul.f32 %v666, 1.442695
    %v670 = vpow.pop %v669
    %v671 = vadd.f32 %v668, 1.0
    %v672 = vadd.f32 %v670, 1.0
    %v673 = vrcp.pop %v671
    %v674 = vmul.f32 1.0, %v673
    %v675 = vrcp.pop %v672
    %v676 = vmul.f32 1.0, %v675
    %v677 = vsel %vm545, %v663, %v674
    %v678 = vsel %vm546, %v664, %v676
    %v679 = vmul.f32 %v677, %v588
    %681 = vrot.lane.b32.xlu0 %v678, 64
    %v682 = vpop.permute.xlu0 %681
    %v684 = vmul.f32 %v677, %v682
    %686 = vrot.lane.b32.xlu0 %v684, 64
    %v687 = vpop.permute.xlu0 %686
    %v689 = vadd.f32 %v679, %v687
    %v690 = vtanh.pop %v689
    %692 = vrot.lane.b32.xlu0 %v690, 64
    %v693 = vpop.permute.xlu0 %692
    %v695 = vmul.f32 %v678, %v693
    %v697 = vsel %vm476, %v695, 0
    %699 = vmatprep.subr.mxu0 0.0
    %700 = vmatpush1.msra.mxu0 0.0
    %701 = vmatprep.subr.mxu0 0.0
    %702 = vmatpush1.msra.mxu0 0.0
    %703 = vmatprep.subr.mxu0 0.0
    %704 = vmatpush1.msra.mxu0 0.0
    %705 = vmatprep.subr.mxu0 0.0
    %706 = vmatpush1.msra.mxu0 0.0
    %707 = vmatprep.subr.mxu0 0.0
    %708 = vmatpush1.msra.mxu0 0.0
    %709 = vmatprep.subr.mxu0 0.0
    %710 = vmatpush1.msra.mxu0 0.0
    %711 = vmatprep.subr.mxu0 0.0
    %712 = vmatpush1.msra.mxu0 0.0
    %713 = vmatprep.subr.mxu0 0.0
    %714 = vmatpush1.msra.mxu0 0.0
    %715 = vmatprep.subr.mxu0 %v543
    %716 = vmatpush1.msra.mxu0 %v542
    %717 = vmatprep.subr.mxu0 %v541
    %718 = vmatpush1.msra.mxu0 %v540
    %719 = vmatprep.subr.mxu0 %v539
    %720 = vmatpush1.msra.mxu0 %v538
    %721 = vmatprep.subr.mxu0 %v537
    %722 = vmatpush1.msra.mxu0 %v536
    %723 = vmatprep.subr.mxu0 %v535
    %724 = vmatpush1.msra.mxu0 %v534
    %725 = vmatprep.subr.mxu0 %v533
    %726 = vmatpush1.msra.mxu0 %v532
    %727 = vmatprep.subr.mxu0 %v531
    %728 = vmatpush1.msra.mxu0 %v530
    %729 = vmatprep.subr.mxu0 %v529
    %730 = vmatpush1.msra.mxu0 %v528
    %731 = vmatprep.subr.mxu0 0.0
    %732 = vmatpush2.msra.mxu0 0.0
    %733 = vmatprep.subr.mxu0 0.0
    %734 = vmatpush2.msra.mxu0 0.0
    %735 = vmatprep.subr.mxu0 0.0
    %736 = vmatpush2.msra.mxu0 0.0
    %737 = vmatprep.subr.mxu0 0.0
    %738 = vmatpush2.msra.mxu0 0.0
    %739 = vmatprep.subr.mxu0 0.0
    %740 = vmatpush2.msra.mxu0 0.0
    %741 = vmatprep.subr.mxu0 0.0
    %742 = vmatpush2.msra.mxu0 0.0
    %743 = vmatprep.subr.mxu0 0.0
    %744 = vmatpush2.msra.mxu0 0.0
    %745 = vmatprep.subr.mxu0 0.0
    %746 = vmatpush2.msra.mxu0 0.0
    %747 = vmatprep.subr.mxu0 0.0
    %748 = vmatpush2.msra.mxu0 0.0
    %749 = vmatprep.subr.mxu0 0.0
    %750 = vmatpush2.msra.mxu0 0.0
    %751 = vmatprep.subr.mxu0 0.0
    %752 = vmatpush2.msra.mxu0 0.0
    %753 = vmatprep.subr.mxu0 0.0
    %754 = vmatpush2.msra.mxu0 0.0
    %755 = vmatprep.subr.mxu0 0.0
    %756 = vmatpush2.msra.mxu0 0.0
    %757 = vmatprep.subr.mxu0 0.0
    %758 = vmatpush2.msra.mxu0 0.0
    %759 = vmatprep.subr.mxu0 0.0
    %760 = vmatpush2.msra.mxu0 0.0
    %761 = vmatprep.subr.mxu0 0.0
    %762 = vmatpush2.msra.mxu0 0.0
    %763 = vmatprep.mubr.f32.mxu0 0.0
    %764 = vmatmul.mubr.f32.gmra.mxu0 %v697
    %v765 = vpop.f32.mrf.mxu0
    %v766 = vadd.f32 %v490, %v765
    %v767 = vpop.f32.mrf.mxu0
    %v768 = vadd.f32 %v520, %v767
    %769 = vdwg.mxu0
    %v770 = vtanh.pop %v766
    %v771 = vtanh.pop %v768
    %v772 = vxor.u32 %v766, 2147483648
    %v773 = vxor.u32 %v768, 2147483648
    %v774 = vmul.f32 %v772, 1.442695
    %v775 = vpow.pop %v774
    %v776 = vmul.f32 %v773, 1.442695
    %v777 = vpow.pop %v776
    %v778 = vadd.f32 %v775, 1.0
    %v779 = vadd.f32 %v777, 1.0
    %v780 = vrcp.pop %v778
    %v781 = vmul.f32 1.0, %v780
    %v782 = vrcp.pop %v779
    %v783 = vmul.f32 1.0, %v782
    %v784 = vsel %vm545, %v770, %v781
    %v785 = vsel %vm546, %v771, %v783
    %v786 = vmul.f32 %v784, %v689
    %788 = vrot.lane.b32.xlu0 %v785, 64
    %v789 = vpop.permute.xlu0 %788
    %v791 = vmul.f32 %v784, %v789
    %793 = vrot.lane.b32.xlu0 %v791, 64
    %v794 = vpop.permute.xlu0 %793
    %v796 = vadd.f32 %v786, %v794
    %v797 = vtanh.pop %v796
    %799 = vrot.lane.b32.xlu0 %v797, 64
    %v800 = vpop.permute.xlu0 %799
    %v802 = vmul.f32 %v785, %v800
    %v804 = vsel %vm476, %v802, 0
    %806 = vmatprep.subr.mxu0 0.0
    %807 = vmatpush1.msra.mxu0 0.0
    %808 = vmatprep.subr.mxu0 0.0
    %809 = vmatpush1.msra.mxu0 0.0
    %810 = vmatprep.subr.mxu0 0.0
    %811 = vmatpush1.msra.mxu0 0.0
    %812 = vmatprep.subr.mxu0 0.0
    %813 = vmatpush1.msra.mxu0 0.0
    %814 = vmatprep.subr.mxu0 0.0
    %815 = vmatpush1.msra.mxu0 0.0
    %816 = vmatprep.subr.mxu0 0.0
    %817 = vmatpush1.msra.mxu0 0.0
    %818 = vmatprep.subr.mxu0 0.0
    %819 = vmatpush1.msra.mxu0 0.0
    %820 = vmatprep.subr.mxu0 0.0
    %821 = vmatpush1.msra.mxu0 0.0
    %822 = vmatprep.subr.mxu0 %v543
    %823 = vmatpush1.msra.mxu0 %v542
    %824 = vmatprep.subr.mxu0 %v541
    %825 = vmatpush1.msra.mxu0 %v540
    %826 = vmatprep.subr.mxu0 %v539
    %827 = vmatpush1.msra.mxu0 %v538
    %828 = vmatprep.subr.mxu0 %v537
    %829 = vmatpush1.msra.mxu0 %v536
    %830 = vmatprep.subr.mxu0 %v535
    %831 = vmatpush1.msra.mxu0 %v534
    %832 = vmatprep.subr.mxu0 %v533
    %833 = vmatpush1.msra.mxu0 %v532
    %834 = vmatprep.subr.mxu0 %v531
    %835 = vmatpush1.msra.mxu0 %v530
    %836 = vmatprep.subr.mxu0 %v529
    %837 = vmatpush1.msra.mxu0 %v528
    %838 = vmatprep.subr.mxu0 0.0
    %839 = vmatpush2.msra.mxu0 0.0
    %840 = vmatprep.subr.mxu0 0.0
    %841 = vmatpush2.msra.mxu0 0.0
    %842 = vmatprep.subr.mxu0 0.0
    %843 = vmatpush2.msra.mxu0 0.0
    %844 = vmatprep.subr.mxu0 0.0
    %845 = vmatpush2.msra.mxu0 0.0
    %846 = vmatprep.subr.mxu0 0.0
    %847 = vmatpush2.msra.mxu0 0.0
    %848 = vmatprep.subr.mxu0 0.0
    %849 = vmatpush2.msra.mxu0 0.0
    %850 = vmatprep.subr.mxu0 0.0
    %851 = vmatpush2.msra.mxu0 0.0
    %852 = vmatprep.subr.mxu0 0.0
    %853 = vmatpush2.msra.mxu0 0.0
    %854 = vmatprep.subr.mxu0 0.0
    %855 = vmatpush2.msra.mxu0 0.0
    %856 = vmatprep.subr.mxu0 0.0
    %857 = vmatpush2.msra.mxu0 0.0
    %858 = vmatprep.subr.mxu0 0.0
    %859 = vmatpush2.msra.mxu0 0.0
    %860 = vmatprep.subr.mxu0 0.0
    %861 = vmatpush2.msra.mxu0 0.0
    %862 = vmatprep.subr.mxu0 0.0
    %863 = vmatpush2.msra.mxu0 0.0
    %864 = vmatprep.subr.mxu0 0.0
    %865 = vmatpush2.msra.mxu0 0.0
    %866 = vmatprep.subr.mxu0 0.0
    %867 = vmatpush2.msra.mxu0 0.0
    %868 = vmatprep.subr.mxu0 0.0
    %869 = vmatpush2.msra.mxu0 0.0
    %870 = vmatprep.mubr.f32.mxu0 0.0
    %871 = vmatmul.mubr.f32.gmra.mxu0 %v804
    %v872 = vpop.f32.mrf.mxu0
    %v873 = vadd.f32 %v491, %v872
    %v874 = vpop.f32.mrf.mxu0
    %v875 = vadd.f32 %v521, %v874
    %876 = vdwg.mxu0
    %v877 = vtanh.pop %v873
    %v878 = vtanh.pop %v875
    %v879 = vxor.u32 %v873, 2147483648
    %v880 = vxor.u32 %v875, 2147483648
    %v881 = vmul.f32 %v879, 1.442695
    %v882 = vpow.pop %v881
    %v883 = vmul.f32 %v880, 1.442695
    %v884 = vpow.pop %v883
    %v885 = vadd.f32 %v882, 1.0
    %v886 = vadd.f32 %v884, 1.0
    %v887 = vrcp.pop %v885
    %v888 = vmul.f32 1.0, %v887
    %v889 = vrcp.pop %v886
    %v890 = vmul.f32 1.0, %v889
    %v891 = vsel %vm545, %v877, %v888
    %v892 = vsel %vm546, %v878, %v890
    %v893 = vmul.f32 %v891, %v796
    %895 = vrot.lane.b32.xlu0 %v892, 64
    %v896 = vpop.permute.xlu0 %895
    %v898 = vmul.f32 %v891, %v896
    %900 = vrot.lane.b32.xlu0 %v898, 64
    %v901 = vpop.permute.xlu0 %900
    %v903 = vadd.f32 %v893, %v901
    %v904 = vtanh.pop %v903
    %906 = vrot.lane.b32.xlu0 %v904, 64
    %v907 = vpop.permute.xlu0 %906
    %v909 = vmul.f32 %v892, %v907
    %v911 = vsel %vm476, %v909, 0
    %913 = vmatprep.subr.mxu0 0.0
    %914 = vmatpush1.msra.mxu0 0.0
    %915 = vmatprep.subr.mxu0 0.0
    %916 = vmatpush1.msra.mxu0 0.0
    %917 = vmatprep.subr.mxu0 0.0
    %918 = vmatpush1.msra.mxu0 0.0
    %919 = vmatprep.subr.mxu0 0.0
    %920 = vmatpush1.msra.mxu0 0.0
    %921 = vmatprep.subr.mxu0 0.0
    %922 = vmatpush1.msra.mxu0 0.0
    %923 = vmatprep.subr.mxu0 0.0
    %924 = vmatpush1.msra.mxu0 0.0
    %925 = vmatprep.subr.mxu0 0.0
    %926 = vmatpush1.msra.mxu0 0.0
    %927 = vmatprep.subr.mxu0 0.0
    %928 = vmatpush1.msra.mxu0 0.0
    %929 = vmatprep.subr.mxu0 %v543
    %930 = vmatpush1.msra.mxu0 %v542
    %931 = vmatprep.subr.mxu0 %v541
    %932 = vmatpush1.msra.mxu0 %v540
    %933 = vmatprep.subr.mxu0 %v539
    %934 = vmatpush1.msra.mxu0 %v538
    %935 = vmatprep.subr.mxu0 %v537
    %936 = vmatpush1.msra.mxu0 %v536
    %937 = vmatprep.subr.mxu0 %v535
    %938 = vmatpush1.msra.mxu0 %v534
    %939 = vmatprep.subr.mxu0 %v533
    %940 = vmatpush1.msra.mxu0 %v532
    %941 = vmatprep.subr.mxu0 %v531
    %942 = vmatpush1.msra.mxu0 %v530
    %943 = vmatprep.subr.mxu0 %v529
    %944 = vmatpush1.msra.mxu0 %v528
    %945 = vmatprep.subr.mxu0 0.0
    %946 = vmatpush2.msra.mxu0 0.0
    %947 = vmatprep.subr.mxu0 0.0
    %948 = vmatpush2.msra.mxu0 0.0
    %949 = vmatprep.subr.mxu0 0.0
    %950 = vmatpush2.msra.mxu0 0.0
    %951 = vmatprep.subr.mxu0 0.0
    %952 = vmatpush2.msra.mxu0 0.0
    %953 = vmatprep.subr.mxu0 0.0
    %954 = vmatpush2.msra.mxu0 0.0
    %955 = vmatprep.subr.mxu0 0.0
    %956 = vmatpush2.msra.mxu0 0.0
    %957 = vmatprep.subr.mxu0 0.0
    %958 = vmatpush2.msra.mxu0 0.0
    %959 = vmatprep.subr.mxu0 0.0
    %960 = vmatpush2.msra.mxu0 0.0
    %961 = vmatprep.subr.mxu0 0.0
    %962 = vmatpush2.msra.mxu0 0.0
    %963 = vmatprep.subr.mxu0 0.0
    %964 = vmatpush2.msra.mxu0 0.0
    %965 = vmatprep.subr.mxu0 0.0
    %966 = vmatpush2.msra.mxu0 0.0
    %967 = vmatprep.subr.mxu0 0.0
    %968 = vmatpush2.msra.mxu0 0.0
    %969 = vmatprep.subr.mxu0 0.0
    %970 = vmatpush2.msra.mxu0 0.0
    %971 = vmatprep.subr.mxu0 0.0
    %972 = vmatpush2.msra.mxu0 0.0
    %973 = vmatprep.subr.mxu0 0.0
    %974 = vmatpush2.msra.mxu0 0.0
    %975 = vmatprep.subr.mxu0 0.0
    %976 = vmatpush2.msra.mxu0 0.0
    %977 = vmatprep.mubr.f32.mxu0 0.0
    %978 = vmatmul.mubr.f32.gmra.mxu0 %v911
    %v979 = vpop.f32.mrf.mxu0
    %v980 = vadd.f32 %v492, %v979
    %v981 = vpop.f32.mrf.mxu0
    %v982 = vadd.f32 %v522, %v981
    %983 = vdwg.mxu0
    %v984 = vtanh.pop %v980
    %v985 = vtanh.pop %v982
    %v986 = vxor.u32 %v980, 2147483648
    %v987 = vxor.u32 %v982, 2147483648
    %v988 = vmul.f32 %v986, 1.442695
    %v989 = vpow.pop %v988
    %v990 = vmul.f32 %v987, 1.442695
    %v991 = vpow.pop %v990
    %v992 = vadd.f32 %v989, 1.0
    %v993 = vadd.f32 %v991, 1.0
    %v994 = vrcp.pop %v992
    %v995 = vmul.f32 1.0, %v994
    %v996 = vrcp.pop %v993
    %v997 = vmul.f32 1.0, %v996
    %v998 = vsel %vm545, %v984, %v995
    %v999 = vsel %vm546, %v985, %v997
    %v1000 = vmul.f32 %v998, %v903
    %1002 = vrot.lane.b32.xlu0 %v999, 64
    %v1003 = vpop.permute.xlu0 %1002
    %v1005 = vmul.f32 %v998, %v1003
    %1007 = vrot.lane.b32.xlu0 %v1005, 64
    %v1008 = vpop.permute.xlu0 %1007
    %v1010 = vadd.f32 %v1000, %v1008
    %v1011 = vtanh.pop %v1010
    %1013 = vrot.lane.b32.xlu0 %v1011, 64
    %v1014 = vpop.permute.xlu0 %1013
    %v1016 = vmul.f32 %v999, %v1014
    %v1018 = vsel %vm476, %v1016, 0
    %1020 = vmatprep.subr.mxu0 0.0
    %1021 = vmatpush1.msra.mxu0 0.0
    %1022 = vmatprep.subr.mxu0 0.0
    %1023 = vmatpush1.msra.mxu0 0.0
    %1024 = vmatprep.subr.mxu0 0.0
    %1025 = vmatpush1.msra.mxu0 0.0
    %1026 = vmatprep.subr.mxu0 0.0
    %1027 = vmatpush1.msra.mxu0 0.0
    %1028 = vmatprep.subr.mxu0 0.0
    %1029 = vmatpush1.msra.mxu0 0.0
    %1030 = vmatprep.subr.mxu0 0.0
    %1031 = vmatpush1.msra.mxu0 0.0
    %1032 = vmatprep.subr.mxu0 0.0
    %1033 = vmatpush1.msra.mxu0 0.0
    %1034 = vmatprep.subr.mxu0 0.0
    %1035 = vmatpush1.msra.mxu0 0.0
    %1036 = vmatprep.subr.mxu0 %v543
    %1037 = vmatpush1.msra.mxu0 %v542
    %1038 = vmatprep.subr.mxu0 %v541
    %1039 = vmatpush1.msra.mxu0 %v540
    %1040 = vmatprep.subr.mxu0 %v539
    %1041 = vmatpush1.msra.mxu0 %v538
    %1042 = vmatprep.subr.mxu0 %v537
    %1043 = vmatpush1.msra.mxu0 %v536
    %1044 = vmatprep.subr.mxu0 %v535
    %1045 = vmatpush1.msra.mxu0 %v534
    %1046 = vmatprep.subr.mxu0 %v533
    %1047 = vmatpush1.msra.mxu0 %v532
    %1048 = vmatprep.subr.mxu0 %v531
    %1049 = vmatpush1.msra.mxu0 %v530
    %1050 = vmatprep.subr.mxu0 %v529
    %1051 = vmatpush1.msra.mxu0 %v528
    %1052 = vmatprep.subr.mxu0 0.0
    %1053 = vmatpush2.msra.mxu0 0.0
    %1054 = vmatprep.subr.mxu0 0.0
    %1055 = vmatpush2.msra.mxu0 0.0
    %1056 = vmatprep.subr.mxu0 0.0
    %1057 = vmatpush2.msra.mxu0 0.0
    %1058 = vmatprep.subr.mxu0 0.0
    %1059 = vmatpush2.msra.mxu0 0.0
    %1060 = vmatprep.subr.mxu0 0.0
    %1061 = vmatpush2.msra.mxu0 0.0
    %1062 = vmatprep.subr.mxu0 0.0
    %1063 = vmatpush2.msra.mxu0 0.0
    %1064 = vmatprep.subr.mxu0 0.0
    %1065 = vmatpush2.msra.mxu0 0.0
    %1066 = vmatprep.subr.mxu0 0.0
    %1067 = vmatpush2.msra.mxu0 0.0
    %1068 = vmatprep.subr.mxu0 0.0
    %1069 = vmatpush2.msra.mxu0 0.0
    %1070 = vmatprep.subr.mxu0 0.0
    %1071 = vmatpush2.msra.mxu0 0.0
    %1072 = vmatprep.subr.mxu0 0.0
    %1073 = vmatpush2.msra.mxu0 0.0
    %1074 = vmatprep.subr.mxu0 0.0
    %1075 = vmatpush2.msra.mxu0 0.0
    %1076 = vmatprep.subr.mxu0 0.0
    %1077 = vmatpush2.msra.mxu0 0.0
    %1078 = vmatprep.subr.mxu0 0.0
    %1079 = vmatpush2.msra.mxu0 0.0
    %1080 = vmatprep.subr.mxu0 0.0
    %1081 = vmatpush2.msra.mxu0 0.0
    %1082 = vmatprep.subr.mxu0 0.0
    %1083 = vmatpush2.msra.mxu0 0.0
    %1084 = vmatprep.mubr.f32.mxu0 0.0
    %1085 = vmatmul.mubr.f32.gmra.mxu0 %v1018
    %v1086 = vpop.f32.mrf.mxu0
    %v1087 = vadd.f32 %v493, %v1086
    %v1088 = vpop.f32.mrf.mxu0
    %v1089 = vadd.f32 %v523, %v1088
    %1090 = vdwg.mxu0
    %v1091 = vtanh.pop %v1087
    %v1092 = vtanh.pop %v1089
    %v1093 = vxor.u32 %v1087, 2147483648
    %v1094 = vxor.u32 %v1089, 2147483648
    %v1095 = vmul.f32 %v1093, 1.442695
    %v1096 = vpow.pop %v1095
    %v1097 = vmul.f32 %v1094, 1.442695
    %v1098 = vpow.pop %v1097
    %v1099 = vadd.f32 %v1096, 1.0
    %v1100 = vadd.f32 %v1098, 1.0
    %v1101 = vrcp.pop %v1099
    %v1102 = vmul.f32 1.0, %v1101
    %v1103 = vrcp.pop %v1100
    %v1104 = vmul.f32 1.0, %v1103
    %v1105 = vsel %vm545, %v1091, %v1102
    %v1106 = vsel %vm546, %v1092, %v1104
    %v1107 = vmul.f32 %v1105, %v1010
    %1109 = vrot.lane.b32.xlu0 %v1106, 64
    %v1110 = vpop.permute.xlu0 %1109
    %v1112 = vmul.f32 %v1105, %v1110
    %1114 = vrot.lane.b32.xlu0 %v1112, 64
    %v1115 = vpop.permute.xlu0 %1114
    %v1117 = vadd.f32 %v1107, %v1115
    %v1118 = vtanh.pop %v1117
    %1120 = vrot.lane.b32.xlu0 %v1118, 64
    %v1121 = vpop.permute.xlu0 %1120
    %v1123 = vmul.f32 %v1106, %v1121
    %v1125 = vsel %vm476, %v1123, 0
    %1127 = vmatprep.subr.mxu0 0.0
    %1128 = vmatpush1.msra.mxu0 0.0
    %1129 = vmatprep.subr.mxu0 0.0
    %1130 = vmatpush1.msra.mxu0 0.0
    %1131 = vmatprep.subr.mxu0 0.0
    %1132 = vmatpush1.msra.mxu0 0.0
    %1133 = vmatprep.subr.mxu0 0.0
    %1134 = vmatpush1.msra.mxu0 0.0
    %1135 = vmatprep.subr.mxu0 0.0
    %1136 = vmatpush1.msra.mxu0 0.0
    %1137 = vmatprep.subr.mxu0 0.0
    %1138 = vmatpush1.msra.mxu0 0.0
    %1139 = vmatprep.subr.mxu0 0.0
    %1140 = vmatpush1.msra.mxu0 0.0
    %1141 = vmatprep.subr.mxu0 0.0
    %1142 = vmatpush1.msra.mxu0 0.0
    %1143 = vmatprep.subr.mxu0 %v543
    %1144 = vmatpush1.msra.mxu0 %v542
    %1145 = vmatprep.subr.mxu0 %v541
    %1146 = vmatpush1.msra.mxu0 %v540
    %1147 = vmatprep.subr.mxu0 %v539
    %1148 = vmatpush1.msra.mxu0 %v538
    %1149 = vmatprep.subr.mxu0 %v537
    %1150 = vmatpush1.msra.mxu0 %v536
    %1151 = vmatprep.subr.mxu0 %v535
    %1152 = vmatpush1.msra.mxu0 %v534
    %1153 = vmatprep.subr.mxu0 %v533
    %1154 = vmatpush1.msra.mxu0 %v532
    %1155 = vmatprep.subr.mxu0 %v531
    %1156 = vmatpush1.msra.mxu0 %v530
    %1157 = vmatprep.subr.mxu0 %v529
    %1158 = vmatpush1.msra.mxu0 %v528
    %1159 = vmatprep.subr.mxu0 0.0
    %1160 = vmatpush2.msra.mxu0 0.0
    %1161 = vmatprep.subr.mxu0 0.0
    %1162 = vmatpush2.msra.mxu0 0.0
    %1163 = vmatprep.subr.mxu0 0.0
    %1164 = vmatpush2.msra.mxu0 0.0
    %1165 = vmatprep.subr.mxu0 0.0
    %1166 = vmatpush2.msra.mxu0 0.0
    %1167 = vmatprep.subr.mxu0 0.0
    %1168 = vmatpush2.msra.mxu0 0.0
    %1169 = vmatprep.subr.mxu0 0.0
    %1170 = vmatpush2.msra.mxu0 0.0
    %1171 = vmatprep.subr.mxu0 0.0
    %1172 = vmatpush2.msra.mxu0 0.0
    %1173 = vmatprep.subr.mxu0 0.0
    %1174 = vmatpush2.msra.mxu0 0.0
    %1175 = vmatprep.subr.mxu0 0.0
    %1176 = vmatpush2.msra.mxu0 0.0
    %1177 = vmatprep.subr.mxu0 0.0
    %1178 = vmatpush2.msra.mxu0 0.0
    %1179 = vmatprep.subr.mxu0 0.0
    %1180 = vmatpush2.msra.mxu0 0.0
    %1181 = vmatprep.subr.mxu0 0.0
    %1182 = vmatpush2.msra.mxu0 0.0
    %1183 = vmatprep.subr.mxu0 0.0
    %1184 = vmatpush2.msra.mxu0 0.0
    %1185 = vmatprep.subr.mxu0 0.0
    %1186 = vmatpush2.msra.mxu0 0.0
    %1187 = vmatprep.subr.mxu0 0.0
    %1188 = vmatpush2.msra.mxu0 0.0
    %1189 = vmatprep.subr.mxu0 0.0
    %1190 = vmatpush2.msra.mxu0 0.0
    %1191 = vmatprep.mubr.f32.mxu0 0.0
    %1192 = vmatmul.mubr.f32.gmra.mxu0 %v1125
    %v1193 = vpop.f32.mrf.mxu0
    %v1194 = vadd.f32 %v494, %v1193
    %v1195 = vpop.f32.mrf.mxu0
    %v1196 = vadd.f32 %v524, %v1195
    %1197 = vdwg.mxu0
    %v1198 = vtanh.pop %v1194
    %v1199 = vtanh.pop %v1196
    %v1200 = vxor.u32 %v1194, 2147483648
    %v1201 = vxor.u32 %v1196, 2147483648
    %v1202 = vmul.f32 %v1200, 1.442695
    %v1203 = vpow.pop %v1202
    %v1204 = vmul.f32 %v1201, 1.442695
    %v1205 = vpow.pop %v1204
    %v1206 = vadd.f32 %v1203, 1.0
    %v1207 = vadd.f32 %v1205, 1.0
    %v1208 = vrcp.pop %v1206
    %v1209 = vmul.f32 1.0, %v1208
    %v1210 = vrcp.pop %v1207
    %v1211 = vmul.f32 1.0, %v1210
    %v1212 = vsel %vm545, %v1198, %v1209
    %v1213 = vsel %vm546, %v1199, %v1211
    %v1214 = vmul.f32 %v1212, %v1117
    %1216 = vrot.lane.b32.xlu0 %v1213, 64
    %v1217 = vpop.permute.xlu0 %1216
    %v1219 = vmul.f32 %v1212, %v1217
    %1221 = vrot.lane.b32.xlu0 %v1219, 64
    %v1222 = vpop.permute.xlu0 %1221
    %v1224 = vadd.f32 %v1214, %v1222
    %v1225 = vtanh.pop %v1224
    %1227 = vrot.lane.b32.xlu0 %v1225, 64
    %v1228 = vpop.permute.xlu0 %1227
    %v1230 = vmul.f32 %v1213, %v1228
    %v1232 = vsel %vm476, %v1230, 0
    %1234 = vmatprep.subr.mxu0 0.0
    %1235 = vmatpush1.msra.mxu0 0.0
    %1236 = vmatprep.subr.mxu0 0.0
    %1237 = vmatpush1.msra.mxu0 0.0
    %1238 = vmatprep.subr.mxu0 0.0
    %1239 = vmatpush1.msra.mxu0 0.0
    %1240 = vmatprep.subr.mxu0 0.0
    %1241 = vmatpush1.msra.mxu0 0.0
    %1242 = vmatprep.subr.mxu0 0.0
    %1243 = vmatpush1.msra.mxu0 0.0
    %1244 = vmatprep.subr.mxu0 0.0
    %1245 = vmatpush1.msra.mxu0 0.0
    %1246 = vmatprep.subr.mxu0 0.0
    %1247 = vmatpush1.msra.mxu0 0.0
    %1248 = vmatprep.subr.mxu0 0.0
    %1249 = vmatpush1.msra.mxu0 0.0
    %1250 = vmatprep.subr.mxu0 %v543
    %1251 = vmatpush1.msra.mxu0 %v542
    %1252 = vmatprep.subr.mxu0 %v541
    %1253 = vmatpush1.msra.mxu0 %v540
    %1254 = vmatprep.subr.mxu0 %v539
    %1255 = vmatpush1.msra.mxu0 %v538
    %1256 = vmatprep.subr.mxu0 %v537
    %1257 = vmatpush1.msra.mxu0 %v536
    %1258 = vmatprep.subr.mxu0 %v535
    %1259 = vmatpush1.msra.mxu0 %v534
    %1260 = vmatprep.subr.mxu0 %v533
    %1261 = vmatpush1.msra.mxu0 %v532
    %1262 = vmatprep.subr.mxu0 %v531
    %1263 = vmatpush1.msra.mxu0 %v530
    %1264 = vmatprep.subr.mxu0 %v529
    %1265 = vmatpush1.msra.mxu0 %v528
    %1266 = vmatprep.subr.mxu0 0.0
    %1267 = vmatpush2.msra.mxu0 0.0
    %1268 = vmatprep.subr.mxu0 0.0
    %1269 = vmatpush2.msra.mxu0 0.0
    %1270 = vmatprep.subr.mxu0 0.0
    %1271 = vmatpush2.msra.mxu0 0.0
    %1272 = vmatprep.subr.mxu0 0.0
    %1273 = vmatpush2.msra.mxu0 0.0
    %1274 = vmatprep.subr.mxu0 0.0
    %1275 = vmatpush2.msra.mxu0 0.0
    %1276 = vmatprep.subr.mxu0 0.0
    %1277 = vmatpush2.msra.mxu0 0.0
    %1278 = vmatprep.subr.mxu0 0.0
    %1279 = vmatpush2.msra.mxu0 0.0
    %1280 = vmatprep.subr.mxu0 0.0
    %1281 = vmatpush2.msra.mxu0 0.0
    %1282 = vmatprep.subr.mxu0 0.0
    %1283 = vmatpush2.msra.mxu0 0.0
    %1284 = vmatprep.subr.mxu0 0.0
    %1285 = vmatpush2.msra.mxu0 0.0
    %1286 = vmatprep.subr.mxu0 0.0
    %1287 = vmatpush2.msra.mxu0 0.0
    %1288 = vmatprep.subr.mxu0 0.0
    %1289 = vmatpush2.msra.mxu0 0.0
    %1290 = vmatprep.subr.mxu0 0.0
    %1291 = vmatpush2.msra.mxu0 0.0
    %1292 = vmatprep.subr.mxu0 0.0
    %1293 = vmatpush2.msra.mxu0 0.0
    %1294 = vmatprep.subr.mxu0 0.0
    %1295 = vmatpush2.msra.mxu0 0.0
    %1296 = vmatprep.subr.mxu0 0.0
    %1297 = vmatpush2.msra.mxu0 0.0
    %1298 = vmatprep.mubr.f32.mxu0 0.0
    %1299 = vmatmul.mubr.f32.gmra.mxu0 %v1232
    %v1300 = vpop.f32.mrf.mxu0
    %v1301 = vadd.f32 %v495, %v1300
    %v1302 = vpop.f32.mrf.mxu0
    %v1303 = vadd.f32 %v525, %v1302
    %1304 = vdwg.mxu0
    %v1305 = vtanh.pop %v1301
    %v1306 = vtanh.pop %v1303
    %v1307 = vxor.u32 %v1301, 2147483648
    %v1308 = vxor.u32 %v1303, 2147483648
    %v1309 = vmul.f32 %v1307, 1.442695
    %v1310 = vpow.pop %v1309
    %v1311 = vmul.f32 %v1308, 1.442695
    %v1312 = vpow.pop %v1311
    %v1313 = vadd.f32 %v1310, 1.0
    %v1314 = vadd.f32 %v1312, 1.0
    %v1315 = vrcp.pop %v1313
    %v1316 = vmul.f32 1.0, %v1315
    %v1317 = vrcp.pop %v1314
    %v1318 = vmul.f32 1.0, %v1317
    %v1319 = vsel %vm545, %v1305, %v1316
    %v1320 = vsel %vm546, %v1306, %v1318
    %v1321 = vmul.f32 %v1319, %v1224
    %1323 = vrot.lane.b32.xlu0 %v1320, 64
    %v1324 = vpop.permute.xlu0 %1323
    %v1326 = vmul.f32 %v1319, %v1324
    %1328 = vrot.lane.b32.xlu0 %v1326, 64
    %v1329 = vpop.permute.xlu0 %1328
    %v1331 = vadd.f32 %v1321, %v1329
    %v1332 = vtanh.pop %v1331
    %1334 = vrot.lane.b32.xlu0 %v1332, 64
    %v1335 = vpop.permute.xlu0 %1334
    %v1337 = vmul.f32 %v1320, %v1335
    %v1339 = vsel %vm476, %v1337, 0
    %1341 = vmatprep.subr.mxu0 0.0
    %1342 = vmatpush1.msra.mxu0 0.0
    %1343 = vmatprep.subr.mxu0 0.0
    %1344 = vmatpush1.msra.mxu0 0.0
    %1345 = vmatprep.subr.mxu0 0.0
    %1346 = vmatpush1.msra.mxu0 0.0
    %1347 = vmatprep.subr.mxu0 0.0
    %1348 = vmatpush1.msra.mxu0 0.0
    %1349 = vmatprep.subr.mxu0 0.0
    %1350 = vmatpush1.msra.mxu0 0.0
    %1351 = vmatprep.subr.mxu0 0.0
    %1352 = vmatpush1.msra.mxu0 0.0
    %1353 = vmatprep.subr.mxu0 0.0
    %1354 = vmatpush1.msra.mxu0 0.0
    %1355 = vmatprep.subr.mxu0 0.0
    %1356 = vmatpush1.msra.mxu0 0.0
    %1357 = vmatprep.subr.mxu0 %v543
    %1358 = vmatpush1.msra.mxu0 %v542
    %1359 = vmatprep.subr.mxu0 %v541
    %1360 = vmatpush1.msra.mxu0 %v540
    %1361 = vmatprep.subr.mxu0 %v539
    %1362 = vmatpush1.msra.mxu0 %v538
    %1363 = vmatprep.subr.mxu0 %v537
    %1364 = vmatpush1.msra.mxu0 %v536
    %1365 = vmatprep.subr.mxu0 %v535
    %1366 = vmatpush1.msra.mxu0 %v534
    %1367 = vmatprep.subr.mxu0 %v533
    %1368 = vmatpush1.msra.mxu0 %v532
    %1369 = vmatprep.subr.mxu0 %v531
    %1370 = vmatpush1.msra.mxu0 %v530
    %1371 = vmatprep.subr.mxu0 %v529
    %1372 = vmatpush1.msra.mxu0 %v528
    %1373 = vmatprep.subr.mxu0 0.0
    %1374 = vmatpush2.msra.mxu0 0.0
    %1375 = vmatprep.subr.mxu0 0.0
    %1376 = vmatpush2.msra.mxu0 0.0
    %1377 = vmatprep.subr.mxu0 0.0
    %1378 = vmatpush2.msra.mxu0 0.0
    %1379 = vmatprep.subr.mxu0 0.0
    %1380 = vmatpush2.msra.mxu0 0.0
    %1381 = vmatprep.subr.mxu0 0.0
    %1382 = vmatpush2.msra.mxu0 0.0
    %1383 = vmatprep.subr.mxu0 0.0
    %1384 = vmatpush2.msra.mxu0 0.0
    %1385 = vmatprep.subr.mxu0 0.0
    %1386 = vmatpush2.msra.mxu0 0.0
    %1387 = vmatprep.subr.mxu0 0.0
    %1388 = vmatpush2.msra.mxu0 0.0
    %1389 = vmatprep.subr.mxu0 0.0
    %1390 = vmatpush2.msra.mxu0 0.0
    %1391 = vmatprep.subr.mxu0 0.0
    %1392 = vmatpush2.msra.mxu0 0.0
    %1393 = vmatprep.subr.mxu0 0.0
    %1394 = vmatpush2.msra.mxu0 0.0
    %1395 = vmatprep.subr.mxu0 0.0
    %1396 = vmatpush2.msra.mxu0 0.0
    %1397 = vmatprep.subr.mxu0 0.0
    %1398 = vmatpush2.msra.mxu0 0.0
    %1399 = vmatprep.subr.mxu0 0.0
    %1400 = vmatpush2.msra.mxu0 0.0
    %1401 = vmatprep.subr.mxu0 0.0
    %1402 = vmatpush2.msra.mxu0 0.0
    %1403 = vmatprep.subr.mxu0 0.0
    %1404 = vmatpush2.msra.mxu0 0.0
    %1405 = vmatprep.mubr.f32.mxu0 0.0
    %1406 = vmatmul.mubr.f32.gmra.mxu0 %v1339
    %v1407 = vpop.f32.mrf.mxu0
    %v1408 = vadd.f32 %v496, %v1407
    %v1409 = vpop.f32.mrf.mxu0
    %v1410 = vadd.f32 %v526, %v1409
    %1411 = vdwg.mxu0
    %v1412 = vtanh.pop %v1408
    %v1413 = vtanh.pop %v1410
    %v1414 = vxor.u32 %v1408, 2147483648
    %v1415 = vxor.u32 %v1410, 2147483648
    %v1416 = vmul.f32 %v1414, 1.442695
    %v1417 = vpow.pop %v1416
    %v1418 = vmul.f32 %v1415, 1.442695
    %v1419 = vpow.pop %v1418
    %v1420 = vadd.f32 %v1417, 1.0
    %v1421 = vadd.f32 %v1419, 1.0
    %v1422 = vrcp.pop %v1420
    %v1423 = vmul.f32 1.0, %v1422
    %v1424 = vrcp.pop %v1421
    %v1425 = vmul.f32 1.0, %v1424
    %v1426 = vsel %vm545, %v1412, %v1423
    %v1427 = vsel %vm546, %v1413, %v1425
    %v1428 = vmul.f32 %v1426, %v1331
    %1430 = vrot.lane.b32.xlu0 %v1427, 64
    %v1431 = vpop.permute.xlu0 %1430
    %v1433 = vmul.f32 %v1426, %v1431
    %1435 = vrot.lane.b32.xlu0 %v1433, 64
    %v1436 = vpop.permute.xlu0 %1435
    %v1438 = vadd.f32 %v1428, %v1436
    %v1439 = vtanh.pop %v1438
    %1441 = vrot.lane.b32.xlu0 %v1439, 64
    %v1442 = vpop.permute.xlu0 %1441
    %v1444 = vmul.f32 %v1427, %v1442
    %v1446 = vsel %vm476, %v1444, 0
    %1448 = vmatprep.subr.mxu0 0.0
    %1449 = vmatpush1.msra.mxu0 0.0
    %1450 = vmatprep.subr.mxu0 0.0
    %1451 = vmatpush1.msra.mxu0 0.0
    %1452 = vmatprep.subr.mxu0 0.0
    %1453 = vmatpush1.msra.mxu0 0.0
    %1454 = vmatprep.subr.mxu0 0.0
    %1455 = vmatpush1.msra.mxu0 0.0
    %1456 = vmatprep.subr.mxu0 0.0
    %1457 = vmatpush1.msra.mxu0 0.0
    %1458 = vmatprep.subr.mxu0 0.0
    %1459 = vmatpush1.msra.mxu0 0.0
    %1460 = vmatprep.subr.mxu0 0.0
    %1461 = vmatpush1.msra.mxu0 0.0
    %1462 = vmatprep.subr.mxu0 0.0
    %1463 = vmatpush1.msra.mxu0 0.0
    %1464 = vmatprep.subr.mxu0 %v543
    %1465 = vmatpush1.msra.mxu0 %v542
    %1466 = vmatprep.subr.mxu0 %v541
    %1467 = vmatpush1.msra.mxu0 %v540
    %1468 = vmatprep.subr.mxu0 %v539
    %1469 = vmatpush1.msra.mxu0 %v538
    %1470 = vmatprep.subr.mxu0 %v537
    %1471 = vmatpush1.msra.mxu0 %v536
    %1472 = vmatprep.subr.mxu0 %v535
    %1473 = vmatpush1.msra.mxu0 %v534
    %1474 = vmatprep.subr.mxu0 %v533
    %1475 = vmatpush1.msra.mxu0 %v532
    %1476 = vmatprep.subr.mxu0 %v531
    %1477 = vmatpush1.msra.mxu0 %v530
    %1478 = vmatprep.subr.mxu0 %v529
    %1479 = vmatpush1.msra.mxu0 %v528
    %1480 = vmatprep.subr.mxu0 0.0
    %1481 = vmatpush2.msra.mxu0 0.0
    %1482 = vmatprep.subr.mxu0 0.0
    %1483 = vmatpush2.msra.mxu0 0.0
    %1484 = vmatprep.subr.mxu0 0.0
    %1485 = vmatpush2.msra.mxu0 0.0
    %1486 = vmatprep.subr.mxu0 0.0
    %1487 = vmatpush2.msra.mxu0 0.0
    %1488 = vmatprep.subr.mxu0 0.0
    %1489 = vmatpush2.msra.mxu0 0.0
    %1490 = vmatprep.subr.mxu0 0.0
    %1491 = vmatpush2.msra.mxu0 0.0
    %1492 = vmatprep.subr.mxu0 0.0
    %1493 = vmatpush2.msra.mxu0 0.0
    %1494 = vmatprep.subr.mxu0 0.0
    %1495 = vmatpush2.msra.mxu0 0.0
    %1496 = vmatprep.subr.mxu0 0.0
    %1497 = vmatpush2.msra.mxu0 0.0
    %1498 = vmatprep.subr.mxu0 0.0
    %1499 = vmatpush2.msra.mxu0 0.0
    %1500 = vmatprep.subr.mxu0 0.0
    %1501 = vmatpush2.msra.mxu0 0.0
    %1502 = vmatprep.subr.mxu0 0.0
    %1503 = vmatpush2.msra.mxu0 0.0
    %1504 = vmatprep.subr.mxu0 0.0
    %1505 = vmatpush2.msra.mxu0 0.0
    %1506 = vmatprep.subr.mxu0 0.0
    %1507 = vmatpush2.msra.mxu0 0.0
    %1508 = vmatprep.subr.mxu0 0.0
    %1509 = vmatpush2.msra.mxu0 0.0
    %1510 = vmatprep.subr.mxu0 0.0
    %1511 = vmatpush2.msra.mxu0 0.0
    %1512 = vmatprep.mubr.f32.mxu0 0.0
    %1513 = vmatmul.mubr.f32.gmra.mxu0 %v1446
    %v1514 = vpop.f32.mrf.mxu0
    %v1515 = vadd.f32 %v497, %v1514
    %v1516 = vpop.f32.mrf.mxu0
    %v1517 = vadd.f32 %v527, %v1516
    %1518 = vdwg.mxu0
    %v1519 = vtanh.pop %v1515
    %v1520 = vtanh.pop %v1517
    %v1521 = vxor.u32 %v1515, 2147483648
    %v1522 = vxor.u32 %v1517, 2147483648
    %v1523 = vmul.f32 %v1521, 1.442695
    %v1524 = vpow.pop %v1523
    %v1525 = vmul.f32 %v1522, 1.442695
    %v1526 = vpow.pop %v1525
    %v1527 = vadd.f32 %v1524, 1.0
    %v1528 = vadd.f32 %v1526, 1.0
    %v1529 = vrcp.pop %v1527
    %v1530 = vmul.f32 1.0, %v1529
    %v1531 = vrcp.pop %v1528
    %v1532 = vmul.f32 1.0, %v1531
    %v1533 = vsel %vm545, %v1519, %v1530
    %v1534 = vsel %vm546, %v1520, %v1532
    %v1535 = vmul.f32 %v1533, %v1438
    %1537 = vrot.lane.b32.xlu0 %v1534, 64
    %v1538 = vpop.permute.xlu0 %1537
    %v1540 = vmul.f32 %v1533, %v1538
    %1542 = vrot.lane.b32.xlu0 %v1540, 64
    %v1543 = vpop.permute.xlu0 %1542
    %v1545 = vadd.f32 %v1535, %v1543
    %v1546 = vtanh.pop %v1545
    %1548 = vrot.lane.b32.xlu0 %v1546, 64
    %v1549 = vpop.permute.xlu0 %1548
    %v1551 = vmul.f32 %v1534, %v1549
    %v1552 = vrot.slane %v802, 4
    %v1554 = vrot.slane %v1016, 4
    %v1556 = vrot.slane %v1230, 4
    %v1558 = vrot.slane %v1444, 4
    %vm1560 = vcmask 1043456
    %v1561 = vsel %vm1560, %v695, %v1552
    %v1562 = vsel %vm1560, %v909, %v1554
    %v1563 = vsel %vm1560, %v1123, %v1556
    %v1564 = vsel %vm1560, %v1337, %v1558
    %v1565 = vld [vmem:[#allocation7] sm:$0xff]
    %v1566 = vld [vmem:[#allocation7 + $0x8] sm:$0xff]
    %v1567 = vld [vmem:[#allocation7 + $0x10] sm:$0xff]
    %v1568 = vld [vmem:[#allocation7 + $0x18] sm:$0xff]
    %v1569 = vld [vmem:[%s8] sm:$0x1]
    %v1571 = vlaneseq
    %v1572 = vshrl.u32 %v1571, 7
    %v1573 = vsub.s32 0, %v1572
    %v1574 = vrot.slane %v1569, %v1573
    %1581 = vrot.lane.b32.xlu0 %v1561, 96
    %v1582 = vpop.permute.xlu0 %1581
    %1583 = vrot.lane.b32.xlu0 %v1562, 96
    %v1584 = vpop.permute.xlu0 %1583
    %1585 = vrot.lane.b32.xlu0 %v1563, 96
    %v1586 = vpop.permute.xlu0 %1585
    %1587 = vrot.lane.b32.xlu0 %v1564, 96
    %v1588 = vpop.permute.xlu0 %1587
    %1589 = vrot.lane.b32.xlu0 %v1551, 96
    %v1590 = vpop.permute.xlu0 %1589
    %v1591 = vsel %vm86, %v1582, 0
    %v1593 = vsel %vm86, %v1584, 0
    %v1595 = vsel %vm86, %v1586, 0
    %v1597 = vsel %vm86, %v1588, 0
    %v1599 = vsel %vm86, %v1590, 0
    %1601 = vmatprep.subr.mxu0 0.0
    %1602 = vmatpush1.msra.mxu0 0.0
    %1603 = vmatprep.subr.mxu0 0.0
    %1604 = vmatpush1.msra.mxu0 0.0
    %1605 = vmatprep.subr.mxu0 0.0
    %1606 = vmatpush1.msra.mxu0 0.0
    %1607 = vmatprep.subr.mxu0 0.0
    %1608 = vmatpush1.msra.mxu0 0.0
    %1609 = vmatprep.subr.mxu0 0.0
    %1610 = vmatpush1.msra.mxu0 0.0
    %1611 = vmatprep.subr.mxu0 0.0
    %1612 = vmatpush1.msra.mxu0 0.0
    %1613 = vmatprep.subr.mxu0 0.0
    %1614 = vmatpush1.msra.mxu0 0.0
    %1615 = vmatprep.subr.mxu0 0.0
    %1616 = vmatpush1.msra.mxu0 0.0
    %1617 = vmatprep.subr.mxu0 0.0
    %1618 = vmatpush1.msra.mxu0 0.0
    %1619 = vmatprep.subr.mxu0 0.0
    %1620 = vmatpush1.msra.mxu0 0.0
    %1621 = vmatprep.subr.mxu0 0.0
    %1622 = vmatpush1.msra.mxu0 0.0
    %1623 = vmatprep.subr.mxu0 0.0
    %1624 = vmatpush1.msra.mxu0 0.0
    %1625 = vmatprep.subr.mxu0 0.0
    %1626 = vmatpush1.msra.mxu0 %v1568
    %1627 = vmatprep.subr.mxu0 0.0
    %1628 = vmatpush1.msra.mxu0 %v1567
    %1629 = vmatprep.subr.mxu0 0.0
    %1630 = vmatpush1.msra.mxu0 %v1566
    %1631 = vmatprep.subr.mxu0 0.0
    %1632 = vmatpush1.msra.mxu0 %v1565
    %1633 = vmatprep.subr.mxu0 0.0
    %1634 = vmatpush2.msra.mxu0 0.0
    %1635 = vmatprep.subr.mxu0 0.0
    %1636 = vmatpush2.msra.mxu0 0.0
    %1637 = vmatprep.subr.mxu0 0.0
    %1638 = vmatpush2.msra.mxu0 0.0
    %1639 = vmatprep.subr.mxu0 0.0
    %1640 = vmatpush2.msra.mxu0 0.0
    %1641 = vmatprep.subr.mxu0 0.0
    %1642 = vmatpush2.msra.mxu0 0.0
    %1643 = vmatprep.subr.mxu0 0.0
    %1644 = vmatpush2.msra.mxu0 0.0
    %1645 = vmatprep.subr.mxu0 0.0
    %1646 = vmatpush2.msra.mxu0 0.0
    %1647 = vmatprep.subr.mxu0 0.0
    %1648 = vmatpush2.msra.mxu0 0.0
    %1649 = vmatprep.subr.mxu0 0.0
    %1650 = vmatpush2.msra.mxu0 0.0
    %1651 = vmatprep.subr.mxu0 0.0
    %1652 = vmatpush2.msra.mxu0 0.0
    %1653 = vmatprep.subr.mxu0 0.0
    %1654 = vmatpush2.msra.mxu0 0.0
    %1655 = vmatprep.subr.mxu0 0.0
    %1656 = vmatpush2.msra.mxu0 0.0
    %1657 = vmatprep.subr.mxu0 0.0
    %1658 = vmatpush2.msra.mxu0 0.0
    %1659 = vmatprep.subr.mxu0 0.0
    %1660 = vmatpush2.msra.mxu0 0.0
    %1661 = vmatprep.subr.mxu0 0.0
    %1662 = vmatpush2.msra.mxu0 0.0
    %1663 = vmatprep.subr.mxu0 0.0
    %1664 = vmatpush2.msra.mxu0 0.0
    %1665 = vmatprep.mubr.f32.mxu0 0.0
    %1666 = vmatmul.mubr.f32.gmra.mxu0 %v1591
    %v1667 = vpop.f32.mrf.mxu0
    %v1668 = vadd.f32 %v1574, %v1667
    %v1669 = vpop.f32.mrf.mxu0
    %1670 = vmatprep.mubr.f32.mxu0 0.0
    %1671 = vmatmul.mubr.f32.gmra.mxu0 %v1593
    %v1672 = vpop.f32.mrf.mxu0
    %v1673 = vadd.f32 %v1574, %v1672
    %v1674 = vpop.f32.mrf.mxu0
    %1675 = vmatprep.mubr.f32.mxu0 0.0
    %1676 = vmatmul.mubr.f32.gmra.mxu0 %v1595
    %v1677 = vpop.f32.mrf.mxu0
    %v1678 = vadd.f32 %v1574, %v1677
    %v1679 = vpop.f32.mrf.mxu0
    %1680 = vmatprep.mubr.f32.mxu0 0.0
    %1681 = vmatmul.mubr.f32.gmra.mxu0 %v1597
    %v1682 = vpop.f32.mrf.mxu0
    %v1683 = vadd.f32 %v1574, %v1682
    %v1684 = vpop.f32.mrf.mxu0
    %1685 = vmatprep.mubr.f32.mxu0 0.0
    %1686 = vmatmul.mubr.f32.gmra.mxu0 %v1599
    %v1687 = vpop.f32.mrf.mxu0
    %v1688 = vadd.f32 %v1574, %v1687
    %v1689 = vpop.f32.mrf.mxu0
    %1690 = vdwg.mxu0
    %1691 = vst [vmem:[#allocation8] sm:$0xff] %v1668
    %1692 = vst [vmem:[#allocation8 + $0x8] sm:$0xff] %v1673
    %1693 = vst [vmem:[#allocation8 + $0x10] sm:$0xff] %v1678
    %1694 = vst [vmem:[#allocation8 + $0x18] sm:$0xff] %v1683
    %1695 = vst [vmem:[#allocation8 + $0x20] sm:$0xf] %v1688
    // Predicated region
    $region50: #{tpu_custom_call.1} parent=1 // pred_check
      _
    $region51: #{tpu_custom_call.1} parent=1 // pred_check_branch
      %1697 = sbr.rel (0) target = $region53
    $region52: #{tpu_custom_call.1} parent=1 // pred_region
      %s1699 = ssub.s32 640, 640
      %1700 = vsyncadd [#allocation4], %s1699
      %s1701 = sshll.u32 [#allocation8], 4
      %s1702 = int_to_ptr.vmem [resolvable:$true] %s1701
      %1707 = dma.vmem_to_hbm [thread:$0]  %s1702, 640, %s9, [#allocation4], 128, 128, 8
    $region53: #{tpu_custom_call.1} parent=1 // pred_fallthru
      _
    // Predicated region
    $region54: #{tpu_custom_call.1} parent=1 // pred_check
      _
    $region55: #{tpu_custom_call.1} parent=1 // pred_check_branch
      %1709 = sbr.rel (0) target = $region57
    $region56: #{tpu_custom_call.1} parent=1 // pred_region
      %1710 = dma.done [#allocation4], 640
    $region57: #{tpu_custom_call.1} parent=1 // pred_fallthru
      _
    %1711 = vsyncpa [#allocation3], 1
    %1712 = vsyncpa [#allocation6], 1
    %1713 = vsyncpa [#allocation4], 1

</llo_original>
